<compile_context>
chip_gen: v7x
topology: tpu7x:2x2x1
jax: 0.10.0
libtpu: 0.0.40
codegen_flags: <defaults>
</compile_context>

<pallas_src>
import functools

import jax
import jax.numpy as jnp
from jax.experimental import pallas as pl
from jax.experimental.pallas import tpu as pltpu

_EPS = 1e-5
_SLOPE = 0.01  # LeakyReLU default negative slope
_MIB = 1024 * 1024


def _round_up(x, m):
    return (x + m - 1) // m * m


def _leaky_relu(x):
    return jnp.where(x >= 0, x, _SLOPE * x)


def _layernorm_noaffine(h):
    # Centered (two-pass) variance: cheap here and matches PyTorch LayerNorm more closely
    # than E[x^2] - E[x]^2 when |mean| >> std.
    inv_n = 1.0 / h.shape[-1]
    mu = jnp.sum(h, axis=-1, keepdims=True) * inv_n
    d = h - mu
    var = jnp.sum(d * d, axis=-1, keepdims=True) * inv_n
    return d * jax.lax.rsqrt(var + _EPS)


def _encoder_kernel(x_ref, w1_ref, b1_ref, w2_ref, b2_ref, wo_ref, bo_ref, o_ref):
    # x is streamed in its stored dtype (f32); cast to bf16 only as the MXU operand.
    x = x_ref[...].astype(jnp.bfloat16)

    # Layer 1: Linear (bf16 MXU, f32 acc) -> LayerNorm -> LeakyReLU (post-matmul math in f32).
    h = jnp.dot(x, w1_ref[...], preferred_element_type=jnp.float32) + b1_ref[...]
    h = _leaky_relu(_layernorm_noaffine(h))

    # Layer 2: Linear -> LayerNorm -> LeakyReLU.
    h = jnp.dot(h.astype(jnp.bfloat16), w2_ref[...],
                preferred_element_type=jnp.float32) + b2_ref[...]
    h = _leaky_relu(_layernorm_noaffine(h))

    # Output head (n_hidden -> 1): VPU multiply + XLU lane reduce instead of an N=1 MXU matmul.
    y = jnp.sum(h * wo_ref[...], axis=-1, keepdims=True) + bo_ref[...]
    o_ref[...] = _leaky_relu(y).astype(o_ref.dtype)


@functools.partial(jax.jit, static_argnames=("tile_b", "single_buffer_weights"))
def _encoder_call(x, params, *, tile_b, single_buffer_weights):
    B, n_input = x.shape
    n_hidden = params["w1"].shape[1]
    x_bytes = jnp.dtype(x.dtype).itemsize

    bf16 = jnp.bfloat16
    w1 = params["w1"].astype(bf16)                                  # [n_input, n_hidden]
    w2 = params["w2"].astype(bf16)                                  # [n_hidden, n_hidden]
    b1 = params["b1"].reshape(1, n_hidden).astype(jnp.float32)
    b2 = params["b2"].reshape(1, n_hidden).astype(jnp.float32)
    wo = params["wo"].reshape(1, n_hidden).astype(jnp.float32)
    bo = params["bo"].reshape(1, 1).astype(jnp.float32)

    # --- tile_b selection -------------------------------------------------------------
    # Streaming VMEM budget ~40 MiB (safe on v7x's 64 MiB/TC; generous on v5e/v6e 128 MiB).
    w_res_bytes = (n_input * n_hidden + n_hidden * n_hidden) * 2 + (3 * n_hidden + 1) * 4
    w_bufs = 1 if single_buffer_weights else 2
    per_row = 2 * n_input * x_bytes + 6 * n_hidden * 4 + 2 * 4      # x dbl-buf + f32 temps + out
    budget = 40 * _MIB
    tile_cap = max(8, int((budget - w_bufs * w_res_bytes) // per_row) // 8 * 8)
    # TODO(synk): for very wide gene panels (n_input >~ 16k) add a second "arbitrary" K grid
    # axis with an f32 acc scratch so both the x block and W1 block are K-tiled.

    if tile_b is None:
        tile_b = 2048                                   # big tiles: >= ~1-2 MiB of x per grid step
    tile_b = min(int(tile_b), tile_cap)
    # Ensure >= 2 grid steps whenever B allows, so v7x megacore actually splits the batch axis.
    tile_b = min(tile_b, max(8, _round_up(pl.cdiv(B, 2), 8)))
    tile_b = max(8, _round_up(tile_b, 8))

    grid = (pl.cdiv(B, tile_b),)                        # ragged last tile handled by Pallas

    # --- VMEM limit: always set (v5e default scoped limit is 16 MiB), cap under v7x 64 MiB ---
    vmem_need = (2 * tile_b * n_input * x_bytes
                 + 2 * tile_b * 4
                 + w_bufs * w_res_bytes
                 + 6 * tile_b * n_hidden * 4)
    vmem_limit = min(48 * _MIB, max(int(vmem_need * 5 // 4), 32 * _MIB))

    const2 = lambda i: (0, 0)
    resident = dict(pipeline_mode=pl.Buffered(1)) if single_buffer_weights else {}

    cost = pl.CostEstimate(
        flops=2 * B * (n_input * n_hidden + n_hidden * n_hidden + n_hidden),
        transcendentals=2 * B,                          # one rsqrt per row per LayerNorm
        bytes_accessed=B * n_input * x_bytes + w_res_bytes + B * 4,
    )

    return pl.pallas_call(
        _encoder_kernel,
        out_shape=jax.ShapeDtypeStruct((B, 1), jnp.float32),
        grid_spec=pltpu.PrefetchScalarGridSpec(
            num_scalar_prefetch=0,
            grid=grid,
            in_specs=[
                pl.BlockSpec((tile_b, n_input), lambda i: (i, 0)),        # x: streamed per tile
                pl.BlockSpec((n_input, n_hidden), const2, **resident),    # W1: resident
                pl.BlockSpec((1, n_hidden), const2, **resident),          # b1
                pl.BlockSpec((n_hidden, n_hidden), const2, **resident),   # W2: resident
                pl.BlockSpec((1, n_hidden), const2, **resident),          # b2
                pl.BlockSpec((1, n_hidden), const2, **resident),          # wo (row)
                pl.BlockSpec((1, 1), const2, **resident),                 # bo
            ],
            out_specs=pl.BlockSpec((tile_b, 1), lambda i: (i, 0)),
        ),
        compiler_params=pltpu.CompilerParams(
            dimension_semantics=("parallel",),
            vmem_limit_bytes=vmem_limit,
        ),
        cost_estimate=cost,
    )(x, w1, b1, w2, b2, wo, bo)


def expr_library_size_encoder(x, params, *, tile_b=None):
    """x: [B, n_input] f32; params: dict of pre-transposed ([n_in, n_out]) weights. -> [B, 1] f32."""
    try:
        return _encoder_call(x, params, tile_b=tile_b, single_buffer_weights=True)
    except Exception:
        # Fallback in case this JAX build rejects pipeline_mode=pl.Buffered(1) on pallas_call.
        return _encoder_call(x, params, tile_b=tile_b, single_buffer_weights=False)


def init_params(key, n_input, n_hidden):
    """Deterministic synthetic parameters, stored as [n_in, n_out] (pre-transposed), f32."""
    k1, k2, k3, k4, k5, k6 = jax.random.split(key, 6)
    scale = 0.05
    return {
        "w1": scale * jax.random.normal(k1, (n_input, n_hidden), jnp.float32),
        "b1": scale * jax.random.normal(k2, (1, n_hidden), jnp.float32),
        "w2": scale * jax.random.normal(k3, (n_hidden, n_hidden), jnp.float32),
        "b2": scale * jax.random.normal(k4, (1, n_hidden), jnp.float32),
        "wo": scale * jax.random.normal(k5, (n_hidden, 1), jnp.float32),
        "bo": scale * jax.random.normal(k6, (1, 1), jnp.float32),
    }


def _reference_f32(x, p):
    """Full-f32 reference matching the PyTorch module math."""
    h = jnp.dot(x, p["w1"], precision=jax.lax.Precision.HIGHEST) + p["b1"]
    h = _leaky_relu(_layernorm_noaffine(h))
    h = jnp.dot(h, p["w2"], precision=jax.lax.Precision.HIGHEST) + p["b2"]
    h = _leaky_relu(_layernorm_noaffine(h))
    y = jnp.sum(h * p["wo"].T, axis=-1, keepdims=True) + p["bo"]
    return _leaky_relu(y)


def _reference_bf16_matched(x, p):
    """Reference applying the same bf16 rounding of MXU operands as the kernel (f32 accumulate)."""
    bf16, f32 = jnp.bfloat16, jnp.float32
    xq = x.astype(bf16).astype(f32)
    w1 = p["w1"].astype(bf16).astype(f32)
    w2 = p["w2"].astype(bf16).astype(f32)
    h = jnp.dot(xq, w1, precision=jax.lax.Precision.HIGHEST) + p["b1"]
    h = _leaky_relu(_layernorm_noaffine(h))
    hq = h.astype(bf16).astype(f32)
    h = jnp.dot(hq, w2, precision=jax.lax.Precision.HIGHEST) + p["b2"]
    h = _leaky_relu(_layernorm_noaffine(h))
    y = jnp.sum(h * p["wo"].T, axis=-1, keepdims=True) + p["bo"]
    return _leaky_relu(y)


if __name__ == "__main__":
    # Small, deliberately unaligned shapes: B=40 with the auto tile plan gives a 2-step batch
    # grid with a ragged last tile; n_input=200 is not lane-aligned (block == full feature dim).
    B, n_input, n_hidden = 40, 200, 128   # n_hidden=128 is the module default

    key = jax.random.PRNGKey(0)
    kx, kp = jax.random.split(key)
    x = jax.random.normal(kx, (B, n_input), jnp.float32)
    params = init_params(kp, n_input, n_hidden)

    out = expr_library_size_encoder(x, params)
    out = jax.block_until_ready(out)
    assert out.shape == (B, 1)

    # Tight check against a reference that applies the same bf16 operand rounding.
    ref_q = _reference_bf16_matched(x, params)
    assert jnp.allclose(out, ref_q, atol=1e-2, rtol=1e-2), "mismatch vs bf16-matched reference"

    # Looser check against the full-f32 module semantics (bf16 MXU operands only).
    ref = _reference_f32(x, params)
    assert jnp.allclose(out, ref, atol=6e-2, rtol=6e-2), "mismatch vs f32 reference"

    print("KERNEL_OK")
</pallas_src>

<mosaic_0001>
module attributes {stable_mosaic.version = 11 : i64} {
  func.func @_encoder_kernel(%arg0: i32, %arg1: memref<24x200xf32, #tpu.memory_space<vmem>>, %arg2: memref<200x128xbf16, #tpu.memory_space<vmem>>, %arg3: memref<1x128xf32, #tpu.memory_space<vmem>>, %arg4: memref<128x128xbf16, #tpu.memory_space<vmem>>, %arg5: memref<1x128xf32, #tpu.memory_space<vmem>>, %arg6: memref<1x128xf32, #tpu.memory_space<vmem>>, %arg7: memref<1x1xf32, #tpu.memory_space<vmem>>, %arg8: memref<24x1xf32, #tpu.memory_space<vmem>>) attributes {dimension_semantics = [#tpu.dimension_semantics<parallel>], iteration_bounds = array<i64: 2>, scalar_prefetch = 0 : i64, scratch_operands = 0 : i64, tpu.core_type = #tpu.core_type<tc>, window_params = [{transform_indices = @transform_0, window_bounds = array<i64: 24, 200>}, {pipeline_mode = #tpu.pipeline_mode<synchronous>, transform_indices = @transform_1, window_bounds = array<i64: 200, 128>}, {pipeline_mode = #tpu.pipeline_mode<synchronous>, transform_indices = @transform_2, window_bounds = array<i64: 1, 128>}, {pipeline_mode = #tpu.pipeline_mode<synchronous>, transform_indices = @transform_3, window_bounds = array<i64: 128, 128>}, {pipeline_mode = #tpu.pipeline_mode<synchronous>, transform_indices = @transform_4, window_bounds = array<i64: 1, 128>}, {pipeline_mode = #tpu.pipeline_mode<synchronous>, transform_indices = @transform_5, window_bounds = array<i64: 1, 128>}, {pipeline_mode = #tpu.pipeline_mode<synchronous>, transform_indices = @transform_6, window_bounds = array<i64: 1, 1>}, {transform_indices = @transform_7, window_bounds = array<i64: 24, 1>}]} {
    %c0 = arith.constant 0 : index
    %c0_0 = arith.constant 0 : index
    %0 = vector.load %arg1[%c0, %c0_0] : memref<24x200xf32, #tpu.memory_space<vmem>>, vector<24x200xf32>
    %1 = arith.truncf %0 : vector<24x200xf32> to vector<24x200xbf16>
    %c0_1 = arith.constant 0 : index
    %c0_2 = arith.constant 0 : index
    %2 = vector.load %arg2[%c0_1, %c0_2] : memref<200x128xbf16, #tpu.memory_space<vmem>>, vector<200x128xbf16>
    %cst = arith.constant dense<0.000000e+00> : vector<24x128xf32>
    %3 = tpu.matmul %1, %2, %cst {dimension_numbers = #tpu.dot_dimension_numbers<[1], [0], [0], [1], [0, 0, 1, 1], [], []>} : vector<24x200xbf16>, vector<200x128xbf16>, vector<24x128xf32> -> vector<24x128xf32>
    %c0_3 = arith.constant 0 : index
    %c0_4 = arith.constant 0 : index
    %4 = vector.load %arg3[%c0_3, %c0_4] : memref<1x128xf32, #tpu.memory_space<vmem>>, vector<1x128xf32>
    %5 = vector.broadcast %4 : vector<1x128xf32> to vector<24x128xf32>
    %6 = arith.addf %3, %5 : vector<24x128xf32>
    %cst_5 = arith.constant dense<0.000000e+00> : vector<24xf32>
    %7 = vector.multi_reduction <add>, %6, %cst_5 [1] : vector<24x128xf32> to vector<24xf32>
    %8 = vector.shape_cast %7 : vector<24xf32> to vector<24x1xf32>
    %cst_6 = arith.constant 7.812500e-03 : f32
    %9 = vector.broadcast %cst_6 : f32 to vector<24x1xf32>
    %10 = arith.mulf %8, %9 : vector<24x1xf32>
    %11 = vector.broadcast %10 : vector<24x1xf32> to vector<24x128xf32>
    %12 = arith.subf %6, %11 : vector<24x128xf32>
    %13 = arith.mulf %12, %12 : vector<24x128xf32>
    %cst_7 = arith.constant dense<0.000000e+00> : vector<24xf32>
    %14 = vector.multi_reduction <add>, %13, %cst_7 [1] : vector<24x128xf32> to vector<24xf32>
    %15 = vector.shape_cast %14 : vector<24xf32> to vector<24x1xf32>
    %cst_8 = arith.constant 7.812500e-03 : f32
    %16 = vector.broadcast %cst_8 : f32 to vector<24x1xf32>
    %17 = arith.mulf %15, %16 : vector<24x1xf32>
    %cst_9 = arith.constant 9.99999974E-6 : f32
    %18 = vector.broadcast %cst_9 : f32 to vector<24x1xf32>
    %19 = arith.addf %17, %18 : vector<24x1xf32>
    %20 = math.rsqrt %19 : vector<24x1xf32>
    %21 = vector.broadcast %20 : vector<24x1xf32> to vector<24x128xf32>
    %22 = arith.mulf %12, %21 : vector<24x128xf32>
    %cst_10 = arith.constant 0.000000e+00 : f32
    %23 = vector.broadcast %cst_10 : f32 to vector<24x128xf32>
    %24 = arith.cmpf oge, %22, %23 : vector<24x128xf32>
    %cst_11 = arith.constant 0.00999999977 : f32
    %25 = vector.broadcast %cst_11 : f32 to vector<24x128xf32>
    %26 = arith.mulf %25, %22 : vector<24x128xf32>
    %27 = arith.select %24, %22, %26 : vector<24x128xi1>, vector<24x128xf32>
    %28 = arith.truncf %27 : vector<24x128xf32> to vector<24x128xbf16>
    %c0_12 = arith.constant 0 : index
    %c0_13 = arith.constant 0 : index
    %29 = vector.load %arg4[%c0_12, %c0_13] : memref<128x128xbf16, #tpu.memory_space<vmem>>, vector<128x128xbf16>
    %cst_14 = arith.constant dense<0.000000e+00> : vector<24x128xf32>
    %30 = tpu.matmul %28, %29, %cst_14 {dimension_numbers = #tpu.dot_dimension_numbers<[1], [0], [0], [1], [0, 0, 1, 1], [], []>} : vector<24x128xbf16>, vector<128x128xbf16>, vector<24x128xf32> -> vector<24x128xf32>
    %c0_15 = arith.constant 0 : index
    %c0_16 = arith.constant 0 : index
    %31 = vector.load %arg5[%c0_15, %c0_16] : memref<1x128xf32, #tpu.memory_space<vmem>>, vector<1x128xf32>
    %32 = vector.broadcast %31 : vector<1x128xf32> to vector<24x128xf32>
    %33 = arith.addf %30, %32 : vector<24x128xf32>
    %cst_17 = arith.constant dense<0.000000e+00> : vector<24xf32>
    %34 = vector.multi_reduction <add>, %33, %cst_17 [1] : vector<24x128xf32> to vector<24xf32>
    %35 = vector.shape_cast %34 : vector<24xf32> to vector<24x1xf32>
    %cst_18 = arith.constant 7.812500e-03 : f32
    %36 = vector.broadcast %cst_18 : f32 to vector<24x1xf32>
    %37 = arith.mulf %35, %36 : vector<24x1xf32>
    %38 = vector.broadcast %37 : vector<24x1xf32> to vector<24x128xf32>
    %39 = arith.subf %33, %38 : vector<24x128xf32>
    %40 = arith.mulf %39, %39 : vector<24x128xf32>
    %cst_19 = arith.constant dense<0.000000e+00> : vector<24xf32>
    %41 = vector.multi_reduction <add>, %40, %cst_19 [1] : vector<24x128xf32> to vector<24xf32>
    %42 = vector.shape_cast %41 : vector<24xf32> to vector<24x1xf32>
    %cst_20 = arith.constant 7.812500e-03 : f32
    %43 = vector.broadcast %cst_20 : f32 to vector<24x1xf32>
    %44 = arith.mulf %42, %43 : vector<24x1xf32>
    %cst_21 = arith.constant 9.99999974E-6 : f32
    %45 = vector.broadcast %cst_21 : f32 to vector<24x1xf32>
    %46 = arith.addf %44, %45 : vector<24x1xf32>
    %47 = math.rsqrt %46 : vector<24x1xf32>
    %48 = vector.broadcast %47 : vector<24x1xf32> to vector<24x128xf32>
    %49 = arith.mulf %39, %48 : vector<24x128xf32>
    %cst_22 = arith.constant 0.000000e+00 : f32
    %50 = vector.broadcast %cst_22 : f32 to vector<24x128xf32>
    %51 = arith.cmpf oge, %49, %50 : vector<24x128xf32>
    %cst_23 = arith.constant 0.00999999977 : f32
    %52 = vector.broadcast %cst_23 : f32 to vector<24x128xf32>
    %53 = arith.mulf %52, %49 : vector<24x128xf32>
    %54 = arith.select %51, %49, %53 : vector<24x128xi1>, vector<24x128xf32>
    %c0_24 = arith.constant 0 : index
    %c0_25 = arith.constant 0 : index
    %55 = vector.load %arg6[%c0_24, %c0_25] : memref<1x128xf32, #tpu.memory_space<vmem>>, vector<1x128xf32>
    %56 = vector.broadcast %55 : vector<1x128xf32> to vector<24x128xf32>
    %57 = arith.mulf %54, %56 : vector<24x128xf32>
    %cst_26 = arith.constant dense<0.000000e+00> : vector<24xf32>
    %58 = vector.multi_reduction <add>, %57, %cst_26 [1] : vector<24x128xf32> to vector<24xf32>
    %59 = vector.shape_cast %58 : vector<24xf32> to vector<24x1xf32>
    %c0_27 = arith.constant 0 : index
    %c0_28 = arith.constant 0 : index
    %60 = vector.load %arg7[%c0_27, %c0_28] : memref<1x1xf32, #tpu.memory_space<vmem>>, vector<1x1xf32>
    %61 = vector.broadcast %60 : vector<1x1xf32> to vector<24x1xf32>
    %62 = arith.addf %59, %61 : vector<24x1xf32>
    %cst_29 = arith.constant 0.000000e+00 : f32
    %63 = vector.broadcast %cst_29 : f32 to vector<24x1xf32>
    %64 = arith.cmpf oge, %62, %63 : vector<24x1xf32>
    %cst_30 = arith.constant 0.00999999977 : f32
    %65 = vector.broadcast %cst_30 : f32 to vector<24x1xf32>
    %66 = arith.mulf %65, %62 : vector<24x1xf32>
    %67 = arith.select %64, %62, %66 : vector<24x1xi1>, vector<24x1xf32>
    %c0_31 = arith.constant 0 : index
    %c0_32 = arith.constant 0 : index
    %68 = vector.load %arg8[%c0_31, %c0_32] : memref<24x1xf32, #tpu.memory_space<vmem>>, vector<24x1xf32>
    tpu.vector_store %arg8[%c0_31, %c0_32], %67 {strides = array<i32>} : memref<24x1xf32, #tpu.memory_space<vmem>>, vector<24x1xf32>,
    return
  }
  func.func @transform_0(%arg0: i32) -> (i32, i32) {
    %c0_i32 = arith.constant 0 : i32
    %c0_i32_0 = arith.constant 0 : i32
    return %arg0, %c0_i32 : i32, i32
  }
  func.func @transform_1(%arg0: i32) -> (i32, i32) {
    %c0_i32 = arith.constant 0 : i32
    %c0_i32_0 = arith.constant 0 : i32
    %c0_i32_1 = arith.constant 0 : i32
    return %c0_i32, %c0_i32_0 : i32, i32
  }
  func.func @transform_2(%arg0: i32) -> (i32, i32) {
    %c0_i32 = arith.constant 0 : i32
    %c0_i32_0 = arith.constant 0 : i32
    %c0_i32_1 = arith.constant 0 : i32
    return %c0_i32, %c0_i32_0 : i32, i32
  }
  func.func @transform_3(%arg0: i32) -> (i32, i32) {
    %c0_i32 = arith.constant 0 : i32
    %c0_i32_0 = arith.constant 0 : i32
    %c0_i32_1 = arith.constant 0 : i32
    return %c0_i32, %c0_i32_0 : i32, i32
  }
  func.func @transform_4(%arg0: i32) -> (i32, i32) {
    %c0_i32 = arith.constant 0 : i32
    %c0_i32_0 = arith.constant 0 : i32
    %c0_i32_1 = arith.constant 0 : i32
    return %c0_i32, %c0_i32_0 : i32, i32
  }
  func.func @transform_5(%arg0: i32) -> (i32, i32) {
    %c0_i32 = arith.constant 0 : i32
    %c0_i32_0 = arith.constant 0 : i32
    %c0_i32_1 = arith.constant 0 : i32
    return %c0_i32, %c0_i32_0 : i32, i32
  }
  func.func @transform_6(%arg0: i32) -> (i32, i32) {
    %c0_i32 = arith.constant 0 : i32
    %c0_i32_0 = arith.constant 0 : i32
    %c0_i32_1 = arith.constant 0 : i32
    return %c0_i32, %c0_i32_0 : i32, i32
  }
  func.func @transform_7(%arg0: i32) -> (i32, i32) {
    %c0_i32 = arith.constant 0 : i32
    %c0_i32_0 = arith.constant 0 : i32
    return %arg0, %c0_i32 : i32, i32
  }
}

module attributes {stable_mosaic.version = 11 : i64} {
  func.func @_encoder_kernel(%arg0: i32, %arg1: memref<24x200xf32, #tpu.memory_space<vmem>>, %arg2: memref<200x128xbf16, #tpu.memory_space<vmem>>, %arg3: memref<1x128xf32, #tpu.memory_space<vmem>>, %arg4: memref<128x128xbf16, #tpu.memory_space<vmem>>, %arg5: memref<1x128xf32, #tpu.memory_space<vmem>>, %arg6: memref<1x128xf32, #tpu.memory_space<vmem>>, %arg7: memref<1x1xf32, #tpu.memory_space<vmem>>, %arg8: memref<24x1xf32, #tpu.memory_space<vmem>>) attributes {dimension_semantics = [#tpu.dimension_semantics<parallel>], iteration_bounds = array<i64: 2>, scalar_prefetch = 0 : i64, scratch_operands = 0 : i64, tpu.core_type = #tpu.core_type<tc>, window_params = [{transform_indices = @transform_0, window_bounds = array<i64: 24, 200>}, {pipeline_mode = #tpu.pipeline_mode<synchronous>, transform_indices = @transform_1, window_bounds = array<i64: 200, 128>}, {pipeline_mode = #tpu.pipeline_mode<synchronous>, transform_indices = @transform_2, window_bounds = array<i64: 1, 128>}, {pipeline_mode = #tpu.pipeline_mode<synchronous>, transform_indices = @transform_3, window_bounds = array<i64: 128, 128>}, {pipeline_mode = #tpu.pipeline_mode<synchronous>, transform_indices = @transform_4, window_bounds = array<i64: 1, 128>}, {pipeline_mode = #tpu.pipeline_mode<synchronous>, transform_indices = @transform_5, window_bounds = array<i64: 1, 128>}, {pipeline_mode = #tpu.pipeline_mode<synchronous>, transform_indices = @transform_6, window_bounds = array<i64: 1, 1>}, {transform_indices = @transform_7, window_bounds = array<i64: 24, 1>}]} {
    %c0 = arith.constant 0 : index
    %c0_0 = arith.constant 0 : index
    %0 = vector.load %arg1[%c0, %c0_0] : memref<24x200xf32, #tpu.memory_space<vmem>>, vector<24x200xf32>
    %1 = arith.truncf %0 : vector<24x200xf32> to vector<24x200xbf16>
    %c0_1 = arith.constant 0 : index
    %c0_2 = arith.constant 0 : index
    %2 = vector.load %arg2[%c0_1, %c0_2] : memref<200x128xbf16, #tpu.memory_space<vmem>>, vector<200x128xbf16>
    %cst = arith.constant dense<0.000000e+00> : vector<24x128xf32>
    %3 = tpu.matmul %1, %2, %cst {dimension_numbers = #tpu.dot_dimension_numbers<[1], [0], [0], [1], [0, 0, 1, 1], [], []>} : vector<24x200xbf16>, vector<200x128xbf16>, vector<24x128xf32> -> vector<24x128xf32>
    %c0_3 = arith.constant 0 : index
    %c0_4 = arith.constant 0 : index
    %4 = vector.load %arg3[%c0_3, %c0_4] : memref<1x128xf32, #tpu.memory_space<vmem>>, vector<1x128xf32>
    %5 = vector.broadcast %4 : vector<1x128xf32> to vector<24x128xf32>
    %6 = arith.addf %3, %5 : vector<24x128xf32>
    %cst_5 = arith.constant dense<0.000000e+00> : vector<24xf32>
    %7 = vector.multi_reduction <add>, %6, %cst_5 [1] : vector<24x128xf32> to vector<24xf32>
    %8 = vector.shape_cast %7 : vector<24xf32> to vector<24x1xf32>
    %cst_6 = arith.constant 7.812500e-03 : f32
    %9 = vector.broadcast %cst_6 : f32 to vector<24x1xf32>
    %10 = arith.mulf %8, %9 : vector<24x1xf32>
    %11 = vector.broadcast %10 : vector<24x1xf32> to vector<24x128xf32>
    %12 = arith.subf %6, %11 : vector<24x128xf32>
    %13 = arith.mulf %12, %12 : vector<24x128xf32>
    %cst_7 = arith.constant dense<0.000000e+00> : vector<24xf32>
    %14 = vector.multi_reduction <add>, %13, %cst_7 [1] : vector<24x128xf32> to vector<24xf32>
    %15 = vector.shape_cast %14 : vector<24xf32> to vector<24x1xf32>
    %cst_8 = arith.constant 7.812500e-03 : f32
    %16 = vector.broadcast %cst_8 : f32 to vector<24x1xf32>
    %17 = arith.mulf %15, %16 : vector<24x1xf32>
    %cst_9 = arith.constant 9.99999974E-6 : f32
    %18 = vector.broadcast %cst_9 : f32 to vector<24x1xf32>
    %19 = arith.addf %17, %18 : vector<24x1xf32>
    %20 = math.rsqrt %19 : vector<24x1xf32>
    %21 = vector.broadcast %20 : vector<24x1xf32> to vector<24x128xf32>
    %22 = arith.mulf %12, %21 : vector<24x128xf32>
    %cst_10 = arith.constant 0.000000e+00 : f32
    %23 = vector.broadcast %cst_10 : f32 to vector<24x128xf32>
    %24 = arith.cmpf oge, %22, %23 : vector<24x128xf32>
    %cst_11 = arith.constant 0.00999999977 : f32
    %25 = vector.broadcast %cst_11 : f32 to vector<24x128xf32>
    %26 = arith.mulf %25, %22 : vector<24x128xf32>
    %27 = arith.select %24, %22, %26 : vector<24x128xi1>, vector<24x128xf32>
    %28 = arith.truncf %27 : vector<24x128xf32> to vector<24x128xbf16>
    %c0_12 = arith.constant 0 : index
    %c0_13 = arith.constant 0 : index
    %29 = vector.load %arg4[%c0_12, %c0_13] : memref<128x128xbf16, #tpu.memory_space<vmem>>, vector<128x128xbf16>
    %cst_14 = arith.constant dense<0.000000e+00> : vector<24x128xf32>
    %30 = tpu.matmul %28, %29, %cst_14 {dimension_numbers = #tpu.dot_dimension_numbers<[1], [0], [0], [1], [0, 0, 1, 1], [], []>} : vector<24x128xbf16>, vector<128x128xbf16>, vector<24x128xf32> -> vector<24x128xf32>
    %c0_15 = arith.constant 0 : index
    %c0_16 = arith.constant 0 : index
    %31 = vector.load %arg5[%c0_15, %c0_16] : memref<1x128xf32, #tpu.memory_space<vmem>>, vector<1x128xf32>
    %32 = vector.broadcast %31 : vector<1x128xf32> to vector<24x128xf32>
    %33 = arith.addf %30, %32 : vector<24x128xf32>
    %cst_17 = arith.constant dense<0.000000e+00> : vector<24xf32>
    %34 = vector.multi_reduction <add>, %33, %cst_17 [1] : vector<24x128xf32> to vector<24xf32>
    %35 = vector.shape_cast %34 : vector<24xf32> to vector<24x1xf32>
    %cst_18 = arith.constant 7.812500e-03 : f32
    %36 = vector.broadcast %cst_18 : f32 to vector<24x1xf32>
    %37 = arith.mulf %35, %36 : vector<24x1xf32>
    %38 = vector.broadcast %37 : vector<24x1xf32> to vector<24x128xf32>
    %39 = arith.subf %33, %38 : vector<24x128xf32>
    %40 = arith.mulf %39, %39 : vector<24x128xf32>
    %cst_19 = arith.constant dense<0.000000e+00> : vector<24xf32>
    %41 = vector.multi_reduction <add>, %40, %cst_19 [1] : vector<24x128xf32> to vector<24xf32>
    %42 = vector.shape_cast %41 : vector<24xf32> to vector<24x1xf32>
    %cst_20 = arith.constant 7.812500e-03 : f32
    %43 = vector.broadcast %cst_20 : f32 to vector<24x1xf32>
    %44 = arith.mulf %42, %43 : vector<24x1xf32>
    %cst_21 = arith.constant 9.99999974E-6 : f32
    %45 = vector.broadcast %cst_21 : f32 to vector<24x1xf32>
    %46 = arith.addf %44, %45 : vector<24x1xf32>
    %47 = math.rsqrt %46 : vector<24x1xf32>
    %48 = vector.broadcast %47 : vector<24x1xf32> to vector<24x128xf32>
    %49 = arith.mulf %39, %48 : vector<24x128xf32>
    %cst_22 = arith.constant 0.000000e+00 : f32
    %50 = vector.broadcast %cst_22 : f32 to vector<24x128xf32>
    %51 = arith.cmpf oge, %49, %50 : vector<24x128xf32>
    %cst_23 = arith.constant 0.00999999977 : f32
    %52 = vector.broadcast %cst_23 : f32 to vector<24x128xf32>
    %53 = arith.mulf %52, %49 : vector<24x128xf32>
    %54 = arith.select %51, %49, %53 : vector<24x128xi1>, vector<24x128xf32>
    %c0_24 = arith.constant 0 : index
    %c0_25 = arith.constant 0 : index
    %55 = vector.load %arg6[%c0_24, %c0_25] : memref<1x128xf32, #tpu.memory_space<vmem>>, vector<1x128xf32>
    %56 = vector.broadcast %55 : vector<1x128xf32> to vector<24x128xf32>
    %57 = arith.mulf %54, %56 : vector<24x128xf32>
    %cst_26 = arith.constant dense<0.000000e+00> : vector<24xf32>
    %58 = vector.multi_reduction <add>, %57, %cst_26 [1] : vector<24x128xf32> to vector<24xf32>
    %59 = vector.shape_cast %58 : vector<24xf32> to vector<24x1xf32>
    %c0_27 = arith.constant 0 : index
    %c0_28 = arith.constant 0 : index
    %60 = vector.load %arg7[%c0_27, %c0_28] : memref<1x1xf32, #tpu.memory_space<vmem>>, vector<1x1xf32>
    %61 = vector.broadcast %60 : vector<1x1xf32> to vector<24x1xf32>
    %62 = arith.addf %59, %61 : vector<24x1xf32>
    %cst_29 = arith.constant 0.000000e+00 : f32
    %63 = vector.broadcast %cst_29 : f32 to vector<24x1xf32>
    %64 = arith.cmpf oge, %62, %63 : vector<24x1xf32>
    %cst_30 = arith.constant 0.00999999977 : f32
    %65 = vector.broadcast %cst_30 : f32 to vector<24x1xf32>
    %66 = arith.mulf %65, %62 : vector<24x1xf32>
    %67 = arith.select %64, %62, %66 : vector<24x1xi1>, vector<24x1xf32>
    %c0_31 = arith.constant 0 : index
    %c0_32 = arith.constant 0 : index
    %68 = vector.load %arg8[%c0_31, %c0_32] : memref<24x1xf32, #tpu.memory_space<vmem>>, vector<24x1xf32>
    tpu.vector_store %arg8[%c0_31, %c0_32], %67 {strides = array<i32>} : memref<24x1xf32, #tpu.memory_space<vmem>>, vector<24x1xf32>,
    return
  }
  func.func @transform_0(%arg0: i32) -> (i32, i32) {
    %c0_i32 = arith.constant 0 : i32
    %c0_i32_0 = arith.constant 0 : i32
    return %arg0, %c0_i32 : i32, i32
  }
  func.func @transform_1(%arg0: i32) -> (i32, i32) {
    %c0_i32 = arith.constant 0 : i32
    %c0_i32_0 = arith.constant 0 : i32
    %c0_i32_1 = arith.constant 0 : i32
    return %c0_i32, %c0_i32_0 : i32, i32
  }
  func.func @transform_2(%arg0: i32) -> (i32, i32) {
    %c0_i32 = arith.constant 0 : i32
    %c0_i32_0 = arith.constant 0 : i32
    %c0_i32_1 = arith.constant 0 : i32
    return %c0_i32, %c0_i32_0 : i32, i32
  }
  func.func @transform_3(%arg0: i32) -> (i32, i32) {
    %c0_i32 = arith.constant 0 : i32
    %c0_i32_0 = arith.constant 0 : i32
    %c0_i32_1 = arith.constant 0 : i32
    return %c0_i32, %c0_i32_0 : i32, i32
  }
  func.func @transform_4(%arg0: i32) -> (i32, i32) {
    %c0_i32 = arith.constant 0 : i32
    %c0_i32_0 = arith.constant 0 : i32
    %c0_i32_1 = arith.constant 0 : i32
    return %c0_i32, %c0_i32_0 : i32, i32
  }
  func.func @transform_5(%arg0: i32) -> (i32, i32) {
    %c0_i32 = arith.constant 0 : i32
    %c0_i32_0 = arith.constant 0 : i32
    %c0_i32_1 = arith.constant 0 : i32
    return %c0_i32, %c0_i32_0 : i32, i32
  }
  func.func @transform_6(%arg0: i32) -> (i32, i32) {
    %c0_i32 = arith.constant 0 : i32
    %c0_i32_0 = arith.constant 0 : i32
    %c0_i32_1 = arith.constant 0 : i32
    return %c0_i32, %c0_i32_0 : i32, i32
  }
  func.func @transform_7(%arg0: i32) -> (i32, i32) {
    %c0_i32 = arith.constant 0 : i32
    %c0_i32_0 = arith.constant 0 : i32
    return %arg0, %c0_i32 : i32, i32
  }
}

</mosaic_0001>

<llo_original>
// kernel: _encoder_call.1
$region0: #{_encoder_call.1}
  #allocation0 [shape = 'u32[]', space=smem, size = 0x4, offset = 0x4, fixed_abs, tag = 'smem constant byte address 0x4 - core index']
  #allocation1 [shape = 'u32[144,128]{1,0:T(1,128)}', space=vmem, size = 0x12000, scoped, tag = 'internal scratch']
  #allocation2 [shape = 'f32[1,1]{1,0:T(1,128)S(1)}', space=vmem, size = 0x200, scoped, tag = 'scoped memory for _encoder_call.1']
  %s0 = inlined_call_operand.vmem [shape: f32[40,200], index: 0, kind: input, shape index: {}]
  %s1 = inlined_call_operand.vmem [shape: bf16[200,128], index: 1, kind: input, shape index: {}]
  %s2 = inlined_call_operand.vmem [shape: f32[1,128], index: 2, kind: input, shape index: {}]
  %s3 = inlined_call_operand.vmem [shape: bf16[128,128], index: 3, kind: input, shape index: {}]
  %s4 = inlined_call_operand.vmem [shape: f32[1,128], index: 4, kind: input, shape index: {}]
  %s5 = inlined_call_operand.vmem [shape: f32[1,128], index: 5, kind: input, shape index: {}]
  %s6 = inlined_call_operand.<no memory space> [shape: f32[1,1], index: 6, kind: input, shape index: {}]
  %s7 = inlined_call_operand.vmem [shape: f32[40,1], index: 7, kind: output, shape index: {}]
  %s8 = sld [smem:[#allocation0]]
  $region109: #{_encoder_call.1} parent=0
    _
  %s10 = ssub.s32 1, %s8
  %s11 = scalar_select 0, %s10, %s8
  %v12 = vstv %s6
  %13 = vst [vmem:[#allocation2] sm:$0x1] %v12
  $region1: #{_encoder_call.1} parent=0
    #allocation3 [shape = 'u8[24576]{0}', space=vmem, size = 0x6000, scoped, tag = 'output window, operand 0']
    loop: start=0, step=1, limit=4
    $region2: #{_encoder_call.1} parent=1 // loop_pre_header
      _
    $region3: #{_encoder_call.1} parent=1 // loop_header
      %s15 = sphi 0, %s19
      %p16 = scmp.ge.s32.totalorder %s15, 4
      %s25 = sphi 0, %s27
      %s28 = sphi 0, %s25
      %s29 = sphi 0, %s28
      %s45 = sphi 0, %s29
      %s49 = sphi 0, %s49
      %s51 = sphi 0, %s49
      %s52 = sphi 0, %s51
      %s66 = sphi 0, %s52
      %s70 = sphi 0, %s70
      %s72 = sphi 0, %s70
      %s73 = sphi 0, %s72
      %s87 = sphi 0, %s73
      %s91 = sphi 0, %s91
      %s93 = sphi 0, %s91
      %s94 = sphi 0, %s93
      %s108 = sphi 0, %s94
      %s112 = sphi 0, %s112
      %s114 = sphi 0, %s112
      %s115 = sphi 0, %s114
      %s129 = sphi 0, %s115
      %s133 = sphi 0, %s133
      %s135 = sphi 0, %s133
      %s136 = sphi 0, %s135
      %s150 = sphi 0, %s136
      %s154 = sphi 0, %s154
      %s156 = sphi 0, %s154
      %s157 = sphi 0, %s156
      %s171 = sphi 0, %s157
      %s177 = sphi 0, %s179
      %s180 = sphi 0, %s177
      %s181 = sphi 0, %s180
      %s197 = sphi 0, %s181
    $region4: #{_encoder_call.1} parent=1 // loop_header_branch
      %18 = sbr.rel (%p16) target = $region8
    $region5: #{_encoder_call.1} parent=1 // loop_body
      %s20 = ssub.s32 %s15, 1
      %s21 = ssub.s32 %s15, 2
      %s22 = sadd.s32 %s15, 1
      %s23 = ssub.s32 %s15, %s22
      %p24 = scmp.eq.s32.totalorder %s23, 0
      %s26 = sadd.s32 %s25, 1
      %s27 = scalar_select %p24, %s25, %s26
      %p30 = pneg %p24
      %p31 = scmp.eq.s32.totalorder %s15, 1
      %p32 = por %p30, %p31
      %p33 = scmp.ne.s32.totalorder %s25, %s28
      %p34 = scmp.eq.s32.totalorder %s15, 0
      %p35 = por %p33, %p34
      %p36 = scmp.ne.s32.totalorder %s25, %s28
      %p37 = scmp.eq.s32.totalorder %s20, 1
      %p38 = por %p36, %p37
      %p39 = scmp.ne.s32.totalorder %s28, %s29
      %p40 = scmp.eq.s32.totalorder %s20, 0
      %p41 = por %p39, %p40
      %p42 = scmp.ne.s32.totalorder %s28, %s29
      %p43 = scmp.eq.s32.totalorder %s21, 1
      %p44 = por %p42, %p43
      %p46 = scmp.ne.s32.totalorder %s29, %s45
      %p47 = scmp.eq.s32.totalorder %s21, 0
      %p48 = por %p46, %p47
      %s50 = sadd.s32 %s49, 1
      %p53 = scmp.eq.s32.totalorder %s15, 1
      %p54 = scmp.ne.s32.totalorder %s49, %s51
      %p55 = scmp.eq.s32.totalorder %s15, 0
      %p56 = por %p54, %p55
      %p57 = scmp.ne.s32.totalorder %s49, %s51
      %p58 = scmp.eq.s32.totalorder %s20, 1
      %p59 = por %p57, %p58
      %p60 = scmp.ne.s32.totalorder %s51, %s52
      %p61 = scmp.eq.s32.totalorder %s20, 0
      %p62 = por %p60, %p61
      %p63 = scmp.ne.s32.totalorder %s51, %s52
      %p64 = scmp.eq.s32.totalorder %s21, 1
      %p65 = por %p63, %p64
      %p67 = scmp.ne.s32.totalorder %s52, %s66
      %p68 = scmp.eq.s32.totalorder %s21, 0
      %p69 = por %p67, %p68
      %s71 = sadd.s32 %s70, 1
      %p74 = scmp.eq.s32.totalorder %s15, 1
      %p75 = scmp.ne.s32.totalorder %s70, %s72
      %p76 = scmp.eq.s32.totalorder %s15, 0
      %p77 = por %p75, %p76
      %p78 = scmp.ne.s32.totalorder %s70, %s72
      %p79 = scmp.eq.s32.totalorder %s20, 1
      %p80 = por %p78, %p79
      %p81 = scmp.ne.s32.totalorder %s72, %s73
      %p82 = scmp.eq.s32.totalorder %s20, 0
      %p83 = por %p81, %p82
      %p84 = scmp.ne.s32.totalorder %s72, %s73
      %p85 = scmp.eq.s32.totalorder %s21, 1
      %p86 = por %p84, %p85
      %p88 = scmp.ne.s32.totalorder %s73, %s87
      %p89 = scmp.eq.s32.totalorder %s21, 0
      %p90 = por %p88, %p89
      %s92 = sadd.s32 %s91, 1
      %p95 = scmp.eq.s32.totalorder %s15, 1
      %p96 = scmp.ne.s32.totalorder %s91, %s93
      %p97 = scmp.eq.s32.totalorder %s15, 0
      %p98 = por %p96, %p97
      %p99 = scmp.ne.s32.totalorder %s91, %s93
      %p100 = scmp.eq.s32.totalorder %s20, 1
      %p101 = por %p99, %p100
      %p102 = scmp.ne.s32.totalorder %s93, %s94
      %p103 = scmp.eq.s32.totalorder %s20, 0
      %p104 = por %p102, %p103
      %p105 = scmp.ne.s32.totalorder %s93, %s94
      %p106 = scmp.eq.s32.totalorder %s21, 1
      %p107 = por %p105, %p106
      %p109 = scmp.ne.s32.totalorder %s94, %s108
      %p110 = scmp.eq.s32.totalorder %s21, 0
      %p111 = por %p109, %p110
      %s113 = sadd.s32 %s112, 1
      %p116 = scmp.eq.s32.totalorder %s15, 1
      %p117 = scmp.ne.s32.totalorder %s112, %s114
      %p118 = scmp.eq.s32.totalorder %s15, 0
      %p119 = por %p117, %p118
      %p120 = scmp.ne.s32.totalorder %s112, %s114
      %p121 = scmp.eq.s32.totalorder %s20, 1
      %p122 = por %p120, %p121
      %p123 = scmp.ne.s32.totalorder %s114, %s115
      %p124 = scmp.eq.s32.totalorder %s20, 0
      %p125 = por %p123, %p124
      %p126 = scmp.ne.s32.totalorder %s114, %s115
      %p127 = scmp.eq.s32.totalorder %s21, 1
      %p128 = por %p126, %p127
      %p130 = scmp.ne.s32.totalorder %s115, %s129
      %p131 = scmp.eq.s32.totalorder %s21, 0
      %p132 = por %p130, %p131
      %s134 = sadd.s32 %s133, 1
      %p137 = scmp.eq.s32.totalorder %s15, 1
      %p138 = scmp.ne.s32.totalorder %s133, %s135
      %p139 = scmp.eq.s32.totalorder %s15, 0
      %p140 = por %p138, %p139
      %p141 = scmp.ne.s32.totalorder %s133, %s135
      %p142 = scmp.eq.s32.totalorder %s20, 1
      %p143 = por %p141, %p142
      %p144 = scmp.ne.s32.totalorder %s135, %s136
      %p145 = scmp.eq.s32.totalorder %s20, 0
      %p146 = por %p144, %p145
      %p147 = scmp.ne.s32.totalorder %s135, %s136
      %p148 = scmp.eq.s32.totalorder %s21, 1
      %p149 = por %p147, %p148
      %p151 = scmp.ne.s32.totalorder %s136, %s150
      %p152 = scmp.eq.s32.totalorder %s21, 0
      %p153 = por %p151, %p152
      %s155 = sadd.s32 %s154, 1
      %p158 = scmp.eq.s32.totalorder %s15, 1
      %p159 = scmp.ne.s32.totalorder %s154, %s156
      %p160 = scmp.eq.s32.totalorder %s15, 0
      %p161 = por %p159, %p160
      %p162 = scmp.ne.s32.totalorder %s154, %s156
      %p163 = scmp.eq.s32.totalorder %s20, 1
      %p164 = por %p162, %p163
      %p165 = scmp.ne.s32.totalorder %s156, %s157
      %p166 = scmp.eq.s32.totalorder %s20, 0
      %p167 = por %p165, %p166
      %p168 = scmp.ne.s32.totalorder %s156, %s157
      %p169 = scmp.eq.s32.totalorder %s21, 1
      %p170 = por %p168, %p169
      %p172 = scmp.ne.s32.totalorder %s157, %s171
      %p173 = scmp.eq.s32.totalorder %s21, 0
      %p174 = por %p172, %p173
      %s175 = ssub.s32 %s15, %s22
      %p176 = scmp.eq.s32.totalorder %s175, 0
      %s178 = sadd.s32 %s177, 1
      %s179 = scalar_select %p176, %s177, %s178
      %p182 = pneg %p176
      %p183 = scmp.eq.s32.totalorder %s15, 1
      %p184 = por %p182, %p183
      %p185 = scmp.ne.s32.totalorder %s177, %s180
      %p186 = scmp.eq.s32.totalorder %s15, 0
      %p187 = por %p185, %p186
      %p188 = scmp.ne.s32.totalorder %s177, %s180
      %p189 = scmp.eq.s32.totalorder %s20, 1
      %p190 = por %p188, %p189
      %p191 = scmp.ne.s32.totalorder %s180, %s181
      %p192 = scmp.eq.s32.totalorder %s20, 0
      %p193 = por %p191, %p192
      %p194 = scmp.ne.s32.totalorder %s180, %s181
      %p195 = scmp.eq.s32.totalorder %s21, 1
      %p196 = por %p194, %p195
      %p198 = scmp.ne.s32.totalorder %s181, %s197
      %p199 = scmp.eq.s32.totalorder %s21, 0
      %p200 = por %p198, %p199
      %p201 = scmp.le.s32.totalorder 1, %s15
      %p202 = scmp.lt.s32.totalorder %s15, 3
      %p203 = pnand %p201, %p202
      %p204 = pneg %p203
      // Predicated region
      $region9: #{_encoder_call.1} parent=5 // pred_check
        _
      $region10: #{_encoder_call.1} parent=5 // pred_check_branch
        %206 = sbr.rel (%p203) target = $region12
      $region11: #{_encoder_call.1} parent=5 // pred_region
        %s207 = ssub.s32 %s15, 1
        // Predicated region
        $region13: #{_encoder_call.1} parent=11 // pred_check
          %p208 = pneg %p62
        $region14: #{_encoder_call.1} parent=11 // pred_check_branch
          %210 = sbr.rel (%p208) target = $region16
        $region15: #{_encoder_call.1} parent=11 // pred_region
          _
        $region16: #{_encoder_call.1} parent=11 // pred_fallthru
          _
        // Predicated region
        $region17: #{_encoder_call.1} parent=11 // pred_check
          %p211 = pneg %p83
        $region18: #{_encoder_call.1} parent=11 // pred_check_branch
          %213 = sbr.rel (%p211) target = $region20
        $region19: #{_encoder_call.1} parent=11 // pred_region
          _
        $region20: #{_encoder_call.1} parent=11 // pred_fallthru
          _
        // Predicated region
        $region21: #{_encoder_call.1} parent=11 // pred_check
          %p214 = pneg %p104
        $region22: #{_encoder_call.1} parent=11 // pred_check_branch
          %216 = sbr.rel (%p214) target = $region24
        $region23: #{_encoder_call.1} parent=11 // pred_region
          _
        $region24: #{_encoder_call.1} parent=11 // pred_fallthru
          _
        // Predicated region
        $region25: #{_encoder_call.1} parent=11 // pred_check
          %p217 = pneg %p125
        $region26: #{_encoder_call.1} parent=11 // pred_check_branch
          %219 = sbr.rel (%p217) target = $region28
        $region27: #{_encoder_call.1} parent=11 // pred_region
          _
        $region28: #{_encoder_call.1} parent=11 // pred_fallthru
          _
        // Predicated region
        $region29: #{_encoder_call.1} parent=11 // pred_check
          %p220 = pneg %p146
        $region30: #{_encoder_call.1} parent=11 // pred_check_branch
          %222 = sbr.rel (%p220) target = $region32
        $region31: #{_encoder_call.1} parent=11 // pred_region
          _
        $region32: #{_encoder_call.1} parent=11 // pred_fallthru
          _
        // Predicated region
        $region33: #{_encoder_call.1} parent=11 // pred_check
          %p223 = pneg %p167
        $region34: #{_encoder_call.1} parent=11 // pred_check_branch
          %225 = sbr.rel (%p223) target = $region36
        $region35: #{_encoder_call.1} parent=11 // pred_region
          _
        $region36: #{_encoder_call.1} parent=11 // pred_fallthru
          _
      $region12: #{_encoder_call.1} parent=5 // pred_fallthru
        _
      %p226 = scmp.lt.s32.totalorder %s15, 2
      // Predicated region
      $region37: #{_encoder_call.1} parent=5 // pred_check
        %p227 = pneg %p226
      $region38: #{_encoder_call.1} parent=5 // pred_check_branch
        %229 = sbr.rel (%p227) target = $region40
      $region39: #{_encoder_call.1} parent=5 // pred_region
        // Predicated region
        $region41: #{_encoder_call.1} parent=39 // pred_check
          %p230 = pneg %p35
        $region42: #{_encoder_call.1} parent=39 // pred_check_branch
          %232 = sbr.rel (%p230) target = $region44
        $region43: #{_encoder_call.1} parent=39 // pred_region
          %s233 = smul.u32 3, %s15
          %s234 = ssub.s32 5, %s233
          %p235 = scmp.lt.s32.totalorder %s234, 3
          %s236 = scalar_select %p235, %s234, 3
          %s237 = smul.u32 128, %s236
          %s238 = smul.u32 %s237, 2
          %p239 = scmp.lt.s32.totalorder %s233, 4
          %s240 = scalar_select %p239, %s233, 4
          %s241 = smul.addr %s240, 2
          %s242 = smul.addr %s241, 8
          %s243 = scalar_lea.vmem %s0, %s242
          %s244 = smul.u32 3, %s15
          %s245 = ssub.s32 5, %s244
          %p246 = scmp.lt.s32.totalorder %s245, 3
          %s247 = scalar_select %p246, %s245, 3
          %s248 = smul.u32 128, %s247
          %s249 = smul.u32 %s248, 2
        $region44: #{_encoder_call.1} parent=39 // pred_fallthru
          _
      $region40: #{_encoder_call.1} parent=5 // pred_fallthru
        _
      %p250 = scmp.le.s32.totalorder 1, %s15
      %p251 = scmp.lt.s32.totalorder %s15, 3
      %p252 = pnand %p250, %p251
      %p253 = pneg %p252
      // Predicated region
      $region45: #{_encoder_call.1} parent=5 // pred_check
        _
      $region46: #{_encoder_call.1} parent=5 // pred_check_branch
        %255 = sbr.rel (%p252) target = $region48
      $region47: #{_encoder_call.1} parent=5 // pred_region
        %s256 = ssub.s32 %s15, 1
        %s257 = smul.u32 3, %s20
        %s258 = ssub.s32 5, %s257
        %p259 = scmp.lt.s32.totalorder %s258, 3
        %s260 = scalar_select %p259, %s258, 3
        %s261 = smul.u32 128, %s260
        %s262 = smul.u32 %s261, 2
        %p263 = scmp.lt.s32.totalorder %s257, 4
        %s264 = scalar_select %p263, %s257, 4
        %s265 = smul.addr %s264, 2
        %s266 = smul.addr %s265, 8
        %s267 = scalar_lea.vmem %s0, %s266
        %p268 = pneg %p41
        %p269 = pneg %p38
        %p270 = pneg %p62
        %p271 = pneg %p59
        %p272 = pneg %p83
        %p273 = pneg %p80
        %p274 = pneg %p104
        %p275 = pneg %p101
        %p276 = pneg %p125
        %p277 = pneg %p122
        %p278 = pneg %p146
        %p279 = pneg %p143
        %p280 = pneg %p167
        %p281 = pneg %p164
        %p282 = pneg %p193
        %p283 = pneg %p190
        %s284 = sand.u32 %s180, 1
        %s285 = sand.u32 %s180, 1
        %s286 = smul.addr %s285, 24
        %s287 = scalar_lea.vmem [#allocation3], %s286
        %s288 = smul.u32 3, %s20
        %s289 = ssub.s32 5, %s288
        %p290 = scmp.lt.s32.totalorder %s289, 3
        %s291 = scalar_select %p290, %s289, 3
        %s292 = smul.u32 128, %s291
        %s293 = smul.u32 %s292, 2
        %p294 = scmp.lt.s32.totalorder %s288, 4
        %s295 = scalar_select %p294, %s288, 4
        %s296 = smul.addr %s295, 2
        %s297 = smul.addr %s296, 8
        %s298 = scalar_lea.vmem %s0, %s297
        %s299 = smul.u32 3, %s20
        %s300 = ssub.s32 5, %s299
        %p301 = scmp.lt.s32.totalorder %s300, 3
        %s302 = scalar_select %p301, %s300, 3
        %s303 = smul.u32 128, %s302
        %s304 = smul.u32 %s303, 2
        %s305 = smul.u32 3, %s20
        %s306 = ssub.s32 5, %s305
        %p307 = scmp.lt.s32.totalorder %s306, 3
        %s308 = scalar_select %p307, %s306, 3
        %s309 = smul.u32 128, %s308
        %v311 = vld [vmem:[%s298] sm:$0xff]
        %v312 = vld [vmem:[%s298 + $0x8] sm:$0xff]
        %v313 = vld [vmem:[%s298 + $0x10] sm:$0xff]
        %v314 = vld [vmem:[%s298 + $0x18] sm:$0xff]
        %v315 = vld [vmem:[%s298 + $0x20] sm:$0xff]
        %v316 = vld [vmem:[%s298 + $0x28] sm:$0xff]
        %v317 = vpack.c.bf16 %v313, %v311
        %v318 = vpack.c.bf16 %v314, %v312
        %v319 = vpack.c.bf16 %v315, %v315
        %v320 = vpack.c.bf16 %v316, %v316
        %v321 = vld [vmem:[%s1] sm:$0xf]
        %v322 = vld [vmem:[%s1 + $0x4] sm:$0xf]
        %v323 = vld [vmem:[%s1 + $0x8] sm:$0xf]
        %v324 = vld [vmem:[%s1 + $0xc] sm:$0xf]
        %v325 = vld [vmem:[%s1 + $0x10] sm:$0xf]
        %v326 = vld [vmem:[%s1 + $0x14] sm:$0xf]
        %v327 = vld [vmem:[%s1 + $0x18] sm:$0xf]
        %v328 = vld [vmem:[%s1 + $0x1c] sm:$0xf]
        %v329 = vld [vmem:[%s1 + $0x20] sm:$0xf]
        %v330 = vld [vmem:[%s1 + $0x24] sm:$0xf]
        %v331 = vld [vmem:[%s1 + $0x28] sm:$0xf]
        %v332 = vld [vmem:[%s1 + $0x2c] sm:$0xf]
        %v333 = vld [vmem:[%s1 + $0x30] sm:$0xf]
        %v334 = vld [vmem:[%s1 + $0x34] sm:$0xf]
        %v335 = vld [vmem:[%s1 + $0x38] sm:$0xf]
        %v336 = vld [vmem:[%s1 + $0x3c] sm:$0xf]
        %v337 = vld [vmem:[%s1 + $0x40] sm:$0xf]
        %v338 = vld [vmem:[%s1 + $0x44] sm:$0xf]
        %v339 = vld [vmem:[%s1 + $0x48] sm:$0xf]
        %v340 = vld [vmem:[%s1 + $0x4c] sm:$0xf]
        %v341 = vld [vmem:[%s1 + $0x50] sm:$0xf]
        %v342 = vld [vmem:[%s1 + $0x54] sm:$0xf]
        %v343 = vld [vmem:[%s1 + $0x58] sm:$0xf]
        %v344 = vld [vmem:[%s1 + $0x5c] sm:$0xf]
        %v345 = vld [vmem:[%s1 + $0x60] sm:$0xf]
        %v346 = vld [vmem:[%s2] sm:$0x1]
        %v348 = vlaneseq
        %v349 = vshrl.u32 %v348, 7
        %v350 = vsub.s32 0, %v349
        %v351 = vrot.slane %v346, %v350
        %v378 = vunpack.c.l.b16 %v321
        %v379 = vunpack.c.l.b16 %v322
        %v380 = vunpack.c.l.b16 %v323
        %v381 = vunpack.c.l.b16 %v324
        %v382 = vunpack.c.l.b16 %v325
        %v383 = vunpack.c.l.b16 %v326
        %v384 = vunpack.c.l.b16 %v327
        %v385 = vunpack.c.l.b16 %v328
        %v386 = vunpack.c.l.b16 %v329
        %v387 = vunpack.c.l.b16 %v330
        %v388 = vunpack.c.l.b16 %v331
        %v389 = vunpack.c.l.b16 %v332
        %v390 = vunpack.c.l.b16 %v333
        %v391 = vunpack.c.l.b16 %v334
        %v392 = vunpack.c.l.b16 %v335
        %v393 = vunpack.c.l.b16 %v336
        %v394 = vunpack.c.l.b16 %v337
        %v395 = vunpack.c.l.b16 %v338
        %v396 = vunpack.c.l.b16 %v339
        %v397 = vunpack.c.l.b16 %v340
        %v398 = vunpack.c.l.b16 %v341
        %v399 = vunpack.c.l.b16 %v342
        %v400 = vunpack.c.l.b16 %v343
        %v401 = vunpack.c.l.b16 %v344
        %v402 = vunpack.c.l.b16 %v345
        %v403 = vpack.c.b16 %v379, %v378
        %v404 = vpack.c.b16 %v381, %v380
        %v405 = vpack.c.b16 %v383, %v382
        %v406 = vpack.c.b16 %v385, %v384
        %v407 = vpack.c.b16 %v387, %v386
        %v408 = vpack.c.b16 %v389, %v388
        %v409 = vpack.c.b16 %v391, %v390
        %v410 = vpack.c.b16 %v393, %v392
        %v411 = vpack.c.b16 %v395, %v394
        %v412 = vpack.c.b16 %v397, %v396
        %v413 = vpack.c.b16 %v399, %v398
        %v414 = vpack.c.b16 %v401, %v400
        %v415 = vpack.c.b16 %v402, %v402
        %vm428 = vcmask 588800
        %v430 = vsel %vm428, %v318, 0
        %v433 = vsel %vm428, %v320, 0
        %vm435 = vcmask 1043456
        %v437 = vsel %vm435, %v415, 0
        %439 = vmatprep.subr.bf16.mxu0 0
        %440 = vmatpush1.bf16.msra.mxu0 %v403
        %441 = vmatprep.subr.bf16.mxu0 0
        %442 = vmatpush1.bf16.msra.mxu0 %v404
        %443 = vmatprep.subr.bf16.mxu0 0
        %444 = vmatpush1.bf16.msra.mxu0 %v405
        %445 = vmatprep.subr.bf16.mxu0 0
        %446 = vmatpush1.bf16.msra.mxu0 %v406
        %447 = vmatprep.subr.bf16.mxu0 0
        %448 = vmatpush1.bf16.msra.mxu0 %v407
        %449 = vmatprep.subr.bf16.mxu0 0
        %450 = vmatpush1.bf16.msra.mxu0 %v408
        %451 = vmatprep.subr.bf16.mxu0 0
        %452 = vmatpush1.bf16.msra.mxu0 %v409
        %453 = vmatprep.subr.bf16.mxu0 0
        %454 = vmatpush1.bf16.msra.mxu0 %v410
        %455 = vmatprep.subr.bf16.mxu0 0
        %456 = vmatpush1.bf16.msra.mxu0 %v411
        %457 = vmatprep.subr.bf16.mxu0 0
        %458 = vmatpush1.bf16.msra.mxu0 %v412
        %459 = vmatprep.subr.bf16.mxu0 0
        %460 = vmatpush1.bf16.msra.mxu0 %v413
        %461 = vmatprep.subr.bf16.mxu0 0
        %462 = vmatpush1.bf16.msra.mxu0 %v414
        %463 = vmatprep.subr.bf16.mxu0 0
        %464 = vmatpush1.bf16.msra.mxu0 %v437
        %465 = vmatprep.subr.bf16.mxu0 0
        %466 = vmatpush1.bf16.msra.mxu0 0
        %467 = vmatprep.subr.bf16.mxu0 0
        %468 = vmatpush1.bf16.msra.mxu0 0
        %469 = vmatprep.subr.bf16.mxu0 0
        %470 = vmatpush1.bf16.msra.mxu0 0
        %471 = vmatprep.mubr.bf16.mxu0 %v430
        %472 = vmatmul.mubr.bf16.gmra.mrb[0].mxu0 %v317
        %v473 = vpop.f32.mrb[0].mxu0
        %v474 = vadd.f32 %v351, %v473
        %v475 = vpop.f32.mrb[0].mxu0
        %v476 = vpop.f32.mrb[0].mxu0
        %v477 = vadd.f32 %v351, %v476
        %v478 = vpop.f32.mrb[0].mxu0
        %479 = vmatprep.mubr.bf16.mxu0 %v433
        %480 = vmatmul.mubr.bf16.gmra.mrb[0].mxu0 %v319
        %v481 = vpop.f32.mrb[0].mxu0
        %v482 = vadd.f32 %v351, %v481
        %v483 = vpop.f32.mrb[0].mxu0
        %v484 = vpop.f32.mrb[0].mxu0
        %v485 = vpop.f32.mrb[0].mxu0
        %486 = vdwg.mxu0
        %487 = vadd.xlane.f32.xlu0 %v474
        %v488 = vpop.xlane.xlu0 %487
        %489 = vadd.xlane.f32.xlu0 %v477
        %v490 = vpop.xlane.xlu0 %489
        %491 = vadd.xlane.f32.xlu0 %v482
        %v492 = vpop.xlane.xlu0 %491
        %v493 = vmul.f32 %v488, 0.0078125
        %v494 = vmul.f32 %v490, 0.0078125
        %v495 = vmul.f32 %v492, 0.0078125
        %v496 = vsub.f32 %v474, %v493
        %v497 = vsub.f32 %v477, %v494
        %v498 = vsub.f32 %v482, %v495
        %v499 = vmul.f32 %v496, %v496
        %v500 = vmul.f32 %v497, %v497
        %v501 = vmul.f32 %v498, %v498
        %502 = vadd.xlane.f32.xlu0 %v499
        %v503 = vpop.xlane.xlu0 %502
        %504 = vadd.xlane.f32.xlu0 %v500
        %v505 = vpop.xlane.xlu0 %504
        %506 = vadd.xlane.f32.xlu0 %v501
        %v507 = vpop.xlane.xlu0 %506
        %v508 = vmul.f32 %v503, 0.0078125
        %v509 = vmul.f32 %v505, 0.0078125
        %v510 = vmul.f32 %v507, 0.0078125
        %v511 = vadd.f32 %v508, 1e-05
        %v512 = vadd.f32 %v509, 1e-05
        %v513 = vadd.f32 %v510, 1e-05
        %v514 = vrsqrt.pop %v511
        %v515 = vrsqrt.pop %v512
        %v516 = vrsqrt.pop %v513
        %v517 = vmul.f32 %v496, %v514
        %v518 = vmul.f32 %v497, %v515
        %v519 = vmul.f32 %v498, %v516
        %vm520 = vcmp.ge.f32.partialorder %v517, 0.0
        %vm521 = vcmp.ge.f32.partialorder %v518, 0.0
        %vm522 = vcmp.ge.f32.partialorder %v519, 0.0
        %v523 = vmul.f32 %v517, 0.01
        %v524 = vmul.f32 %v518, 0.01
        %v525 = vmul.f32 %v519, 0.01
        %v526 = vsel %vm520, %v517, %v523
        %v527 = vsel %vm521, %v518, %v524
        %v528 = vsel %vm522, %v519, %v525
        %v529 = vpack.c.bf16 %v527, %v526
        %v530 = vpack.c.bf16 %v528, %v528
        %v531 = vld [vmem:[%s3] sm:$0xf]
        %v532 = vld [vmem:[%s3 + $0x4] sm:$0xf]
        %v533 = vld [vmem:[%s3 + $0x8] sm:$0xf]
        %v534 = vld [vmem:[%s3 + $0xc] sm:$0xf]
        %v535 = vld [vmem:[%s3 + $0x10] sm:$0xf]
        %v536 = vld [vmem:[%s3 + $0x14] sm:$0xf]
        %v537 = vld [vmem:[%s3 + $0x18] sm:$0xf]
        %v538 = vld [vmem:[%s3 + $0x1c] sm:$0xf]
        %v539 = vld [vmem:[%s3 + $0x20] sm:$0xf]
        %v540 = vld [vmem:[%s3 + $0x24] sm:$0xf]
        %v541 = vld [vmem:[%s3 + $0x28] sm:$0xf]
        %v542 = vld [vmem:[%s3 + $0x2c] sm:$0xf]
        %v543 = vld [vmem:[%s3 + $0x30] sm:$0xf]
        %v544 = vld [vmem:[%s3 + $0x34] sm:$0xf]
        %v545 = vld [vmem:[%s3 + $0x38] sm:$0xf]
        %v546 = vld [vmem:[%s3 + $0x3c] sm:$0xf]
        %v547 = vld [vmem:[%s4] sm:$0x1]
        %v549 = vlaneseq
        %v550 = vshrl.u32 %v549, 7
        %v551 = vsub.s32 0, %v550
        %v552 = vrot.slane %v547, %v551
        %v570 = vunpack.c.l.b16 %v531
        %v571 = vunpack.c.l.b16 %v532
        %v572 = vunpack.c.l.b16 %v533
        %v573 = vunpack.c.l.b16 %v534
        %v574 = vunpack.c.l.b16 %v535
        %v575 = vunpack.c.l.b16 %v536
        %v576 = vunpack.c.l.b16 %v537
        %v577 = vunpack.c.l.b16 %v538
        %v578 = vunpack.c.l.b16 %v539
        %v579 = vunpack.c.l.b16 %v540
        %v580 = vunpack.c.l.b16 %v541
        %v581 = vunpack.c.l.b16 %v542
        %v582 = vunpack.c.l.b16 %v543
        %v583 = vunpack.c.l.b16 %v544
        %v584 = vunpack.c.l.b16 %v545
        %v585 = vunpack.c.l.b16 %v546
        %v586 = vpack.c.b16 %v571, %v570
        %v587 = vpack.c.b16 %v573, %v572
        %v588 = vpack.c.b16 %v575, %v574
        %v589 = vpack.c.b16 %v577, %v576
        %v590 = vpack.c.b16 %v579, %v578
        %v591 = vpack.c.b16 %v581, %v580
        %v592 = vpack.c.b16 %v583, %v582
        %v593 = vpack.c.b16 %v585, %v584
        %602 = vmatprep.subr.bf16.mxu0 0
        %603 = vmatpush1.bf16.msra.mxu0 %v586
        %604 = vmatprep.subr.bf16.mxu0 0
        %605 = vmatpush1.bf16.msra.mxu0 %v587
        %606 = vmatprep.subr.bf16.mxu0 0
        %607 = vmatpush1.bf16.msra.mxu0 %v588
        %608 = vmatprep.subr.bf16.mxu0 0
        %609 = vmatpush1.bf16.msra.mxu0 %v589
        %610 = vmatprep.subr.bf16.mxu0 0
        %611 = vmatpush1.bf16.msra.mxu0 %v590
        %612 = vmatprep.subr.bf16.mxu0 0
        %613 = vmatpush1.bf16.msra.mxu0 %v591
        %614 = vmatprep.subr.bf16.mxu0 0
        %615 = vmatpush1.bf16.msra.mxu0 %v592
        %616 = vmatprep.subr.bf16.mxu0 0
        %617 = vmatpush1.bf16.msra.mxu0 %v593
        %618 = vmatprep.subr.bf16.mxu0 0
        %619 = vmatpush1.bf16.msra.mxu0 0
        %620 = vmatprep.subr.bf16.mxu0 0
        %621 = vmatpush1.bf16.msra.mxu0 0
        %622 = vmatprep.subr.bf16.mxu0 0
        %623 = vmatpush1.bf16.msra.mxu0 0
        %624 = vmatprep.subr.bf16.mxu0 0
        %625 = vmatpush1.bf16.msra.mxu0 0
        %626 = vmatprep.subr.bf16.mxu0 0
        %627 = vmatpush1.bf16.msra.mxu0 0
        %628 = vmatprep.subr.bf16.mxu0 0
        %629 = vmatpush1.bf16.msra.mxu0 0
        %630 = vmatprep.subr.bf16.mxu0 0
        %631 = vmatpush1.bf16.msra.mxu0 0
        %632 = vmatprep.subr.bf16.mxu0 0
        %633 = vmatpush1.bf16.msra.mxu0 0
        %634 = vmatprep.mubr.bf16.mxu0 0
        %635 = vmatmul.mubr.bf16.gmra.mrb[0].mxu0 %v529
        %v636 = vpop.f32.mrb[0].mxu0
        %v637 = vadd.f32 %v552, %v636
        %v638 = vpop.f32.mrb[0].mxu0
        %v639 = vpop.f32.mrb[0].mxu0
        %v640 = vadd.f32 %v552, %v639
        %v641 = vpop.f32.mrb[0].mxu0
        %642 = vmatprep.mubr.bf16.mxu0 0
        %643 = vmatmul.mubr.bf16.gmra.mrb[0].mxu0 %v530
        %v644 = vpop.f32.mrb[0].mxu0
        %v645 = vadd.f32 %v552, %v644
        %v646 = vpop.f32.mrb[0].mxu0
        %v647 = vpop.f32.mrb[0].mxu0
        %v648 = vpop.f32.mrb[0].mxu0
        %649 = vdwg.mxu0
        %650 = vadd.xlane.f32.xlu0 %v637
        %v651 = vpop.xlane.xlu0 %650
        %652 = vadd.xlane.f32.xlu0 %v640
        %v653 = vpop.xlane.xlu0 %652
        %654 = vadd.xlane.f32.xlu0 %v645
        %v655 = vpop.xlane.xlu0 %654
        %v656 = vmul.f32 %v651, 0.0078125
        %v657 = vmul.f32 %v653, 0.0078125
        %v658 = vmul.f32 %v655, 0.0078125
        %v659 = vsub.f32 %v637, %v656
        %v660 = vsub.f32 %v640, %v657
        %v661 = vsub.f32 %v645, %v658
        %v662 = vmul.f32 %v659, %v659
        %v663 = vmul.f32 %v660, %v660
        %v664 = vmul.f32 %v661, %v661
        %665 = vadd.xlane.f32.xlu0 %v662
        %v666 = vpop.xlane.xlu0 %665
        %667 = vadd.xlane.f32.xlu0 %v663
        %v668 = vpop.xlane.xlu0 %667
        %669 = vadd.xlane.f32.xlu0 %v664
        %v670 = vpop.xlane.xlu0 %669
        %v671 = vmul.f32 %v666, 0.0078125
        %v672 = vmul.f32 %v668, 0.0078125
        %v673 = vmul.f32 %v670, 0.0078125
        %v674 = vadd.f32 %v671, 1e-05
        %v675 = vadd.f32 %v672, 1e-05
        %v676 = vadd.f32 %v673, 1e-05
        %v677 = vrsqrt.pop %v674
        %v678 = vrsqrt.pop %v675
        %v679 = vrsqrt.pop %v676
        %v680 = vmul.f32 %v659, %v677
        %v681 = vmul.f32 %v660, %v678
        %v682 = vmul.f32 %v661, %v679
        %vm683 = vcmp.ge.f32.partialorder %v680, 0.0
        %vm684 = vcmp.ge.f32.partialorder %v681, 0.0
        %vm685 = vcmp.ge.f32.partialorder %v682, 0.0
        %v686 = vmul.f32 %v680, 0.01
        %v687 = vmul.f32 %v681, 0.01
        %v688 = vmul.f32 %v682, 0.01
        %v689 = vsel %vm683, %v680, %v686
        %v690 = vsel %vm684, %v681, %v687
        %v691 = vsel %vm685, %v682, %v688
        %v692 = vld [vmem:[%s5] sm:$0x1]
        %v694 = vlaneseq
        %v695 = vshrl.u32 %v694, 7
        %v696 = vsub.s32 0, %v695
        %v697 = vrot.slane %v692, %v696
        %v699 = vmul.f32 %v689, %v697
        %v700 = vmul.f32 %v690, %v697
        %v701 = vmul.f32 %v691, %v697
        %702 = vadd.xlane.f32.xlu0 %v699
        %v703 = vpop.xlane.xlu0 %702
        %704 = vadd.xlane.f32.xlu0 %v700
        %v705 = vpop.xlane.xlu0 %704
        %706 = vadd.xlane.f32.xlu0 %v701
        %v707 = vpop.xlane.xlu0 %706
        %v708 = vld [vmem:[#allocation2] sm:$0x1]
        %v710 = vlaneseq
        %v711 = vshrl.u32 %v710, 7
        %v712 = vsub.s32 0, %v711
        %v713 = vrot.slane %v708, %v712
        %v715 = vadd.f32 %v703, %v713
        %v716 = vadd.f32 %v705, %v713
        %v717 = vadd.f32 %v707, %v713
        %vm718 = vcmp.ge.f32.partialorder %v715, 0.0
        %vm719 = vcmp.ge.f32.partialorder %v716, 0.0
        %vm720 = vcmp.ge.f32.partialorder %v717, 0.0
        %v721 = vmul.f32 %v715, 0.01
        %v722 = vmul.f32 %v716, 0.01
        %v723 = vmul.f32 %v717, 0.01
        %v724 = vsel %vm718, %v715, %v721
        %v725 = vsel %vm719, %v716, %v722
        %v726 = vsel %vm720, %v717, %v723
        %vm727 = vcmask 7168
        %728 = vst.msk [vmem:[%s287] sm:$0xff] %vm727, %v724
        %729 = vst.msk [vmem:[%s287 + $0x8] sm:$0xff] %vm727, %v725
        %730 = vst.msk [vmem:[%s287 + $0x10] sm:$0xff] %vm727, %v726
        %s731 = sand.u32 %s180, 1
        %s732 = sand.u32 %s180, 1
        %s733 = smul.addr %s732, 24
        %s734 = scalar_lea.vmem [#allocation3], %s733
        // Predicated region
        $region49: #{_encoder_call.1} parent=47 // pred_check
          %p735 = pneg %p190
        $region50: #{_encoder_call.1} parent=47 // pred_check_branch
          %737 = sbr.rel (%p735) target = $region52
        $region51: #{_encoder_call.1} parent=47 // pred_region
          %s738 = smul.u32 3, %s20
          %s739 = ssub.s32 5, %s738
          %p740 = scmp.lt.s32.totalorder %s739, 3
          %s741 = scalar_select %p740, %s739, 3
          %s742 = smul.u32 128, %s741
          %p743 = scmp.ne.s32.totalorder 0, %s742
          %s744 = smul.addr %s738, 8
          %s745 = scalar_lea.vmem %s7, %s744
          // Predicated region
          $region53: #{_encoder_call.1} parent=51 // pred_check
            %p746 = pneg %p743
          $region54: #{_encoder_call.1} parent=51 // pred_check_branch
            %748 = sbr.rel (%p746) target = $region56
          $region55: #{_encoder_call.1} parent=51 // pred_region
            // Predicated region
            $region57: #{_encoder_call.1} parent=55 // pred_check
              _
            $region58: #{_encoder_call.1} parent=55 // pred_check_branch
              %750 = sbr.rel (0) target = $region60
            $region59: #{_encoder_call.1} parent=55 // pred_region
              // Predicated region
              $region79: #{_encoder_call.1} parent=59 // pred_check
                _
              $region80: #{_encoder_call.1} parent=59 // pred_check_branch
                %804 = sbr.rel (0) target = $region82
              $region81: #{_encoder_call.1} parent=59 // pred_region
                %s805 = sdiv.u32.pop %s741, 3
                %s806 = srem.u32.pop %s741, 3
                // While loop
                $region83: #{_encoder_call.1} parent=81 // loop_pre_header
                  _
                $region84: #{_encoder_call.1} parent=81 // loop_header
                  %s808 = sphi 0, %s810
                  %p809 = scmp.ge.s32.totalorder %s808, %s805
                  %s813 = sphi 0, %s824
                  %s814 = sphi %s734, %s827
                  %s815 = sphi %s745, %s828
                $region85: #{_encoder_call.1} parent=81 // loop_header_branch
                  %812 = sbr.rel (%p809) target = $region89
                $region86: #{_encoder_call.1} parent=81 // loop_body
                  %v816 = vld [vmem:[%s814] sm:$0xff]
                  %817 = vst [vmem:[%s815] sm:$0xff] %v816
                  %v818 = vld [vmem:[%s814 + $0x8] sm:$0xff]
                  %819 = vst [vmem:[%s815 + $0x8] sm:$0xff] %v818
                  %v820 = vld [vmem:[%s814 + $0x10] sm:$0xff]
                  %821 = vst [vmem:[%s815 + $0x10] sm:$0xff] %v820
                  %s822 = sadd.s32 1, %s813
                  %p823 = scmp.ge.s32.totalorder %s822, %s805
                  %s824 = scalar_select %p823, 0, %s822
                  %s825 = smul.u32 %s824, 24
                  %s826 = smul.u32 %s824, 24
                  %s827 = scalar_lea.vmem %s734, %s825 [#allocation3]
                  %s828 = scalar_lea.vmem %s745, %s826
                $region87: #{_encoder_call.1} parent=81 // loop_footer
                  %s810 = sadd.s32 %s808, 1
                $region88: #{_encoder_call.1} parent=81 // loop_footer_branch
                  %807 = sbr.rel target = $region84
                $region89: #{_encoder_call.1} parent=81 // loop_exit
                  _
                %s829 = sdiv.u32.pop %s741, 3
                %s830 = srem.u32.pop %s741, 3
                %s831 = smul.u32 %s829, 3
                %s832 = smul.u32 8, %s831
                %s833 = scalar_lea.vmem %s734, %s832 [#allocation3]
                %s834 = smul.u32 8, %s831
                %s835 = scalar_lea.vmem %s745, %s834
                // While loop
                $region90: #{_encoder_call.1} parent=81 // loop_pre_header
                  _
                $region91: #{_encoder_call.1} parent=81 // loop_header
                  %s837 = sphi 0, %s839
                  %p838 = scmp.ge.s32.totalorder %s837, %s830
                  %s842 = sphi 0, %s849
                  %s843 = sphi %s833, %s852
                  %s844 = sphi %s835, %s853
                $region92: #{_encoder_call.1} parent=81 // loop_header_branch
                  %841 = sbr.rel (%p838) target = $region96
                $region93: #{_encoder_call.1} parent=81 // loop_body
                  %v845 = vld [vmem:[%s843] sm:$0xff]
                  %846 = vst [vmem:[%s844] sm:$0xff] %v845
                  %s847 = sadd.s32 1, %s842
                  %p848 = scmp.ge.s32.totalorder %s847, %s830
                  %s849 = scalar_select %p848, 0, %s847
                  %s850 = smul.u32 %s849, 8
                  %s851 = smul.u32 %s849, 8
                  %s852 = scalar_lea.vmem %s833, %s850 [#allocation3]
                  %s853 = scalar_lea.vmem %s835, %s851
                $region94: #{_encoder_call.1} parent=81 // loop_footer
                  %s839 = sadd.s32 %s837, 1
                $region95: #{_encoder_call.1} parent=81 // loop_footer_branch
                  %836 = sbr.rel target = $region91
                $region96: #{_encoder_call.1} parent=81 // loop_exit
                  _
              $region82: #{_encoder_call.1} parent=59 // pred_fallthru
                _
              // Predicated region
              $region97: #{_encoder_call.1} parent=59 // pred_check
                _
              $region98: #{_encoder_call.1} parent=59 // pred_check_branch
                %855 = sbr.rel target = $region100
              $region99: #{_encoder_call.1} parent=59 // pred_region
                _
              $region100: #{_encoder_call.1} parent=59 // pred_fallthru
                _
            $region60: #{_encoder_call.1} parent=55 // pred_fallthru
              _
            // Predicated region
            $region61: #{_encoder_call.1} parent=55 // pred_check
              _
            $region62: #{_encoder_call.1} parent=55 // pred_check_branch
              %752 = sbr.rel target = $region64
            $region63: #{_encoder_call.1} parent=55 // pred_region
              %s754 = sdiv.u32.pop %s741, 3
              %s755 = srem.u32.pop %s741, 3
              // While loop
              $region65: #{_encoder_call.1} parent=63 // loop_pre_header
                _
              $region66: #{_encoder_call.1} parent=63 // loop_header
                %s757 = sphi 0, %s759
                %p758 = scmp.ge.s32.totalorder %s757, %s754
                %s762 = sphi 0, %s773
                %s763 = sphi %s734, %s776
                %s764 = sphi %s745, %s777
              $region67: #{_encoder_call.1} parent=63 // loop_header_branch
                %761 = sbr.rel (%p758) target = $region71
              $region68: #{_encoder_call.1} parent=63 // loop_body
                %v765 = vld [vmem:[%s763] sm:$0xff]
                %766 = vst [vmem:[%s764] sm:$0xff] %v765
                %v767 = vld [vmem:[%s763 + $0x8] sm:$0xff]
                %768 = vst [vmem:[%s764 + $0x8] sm:$0xff] %v767
                %v769 = vld [vmem:[%s763 + $0x10] sm:$0xff]
                %770 = vst [vmem:[%s764 + $0x10] sm:$0xff] %v769
                %s771 = sadd.s32 1, %s762
                %p772 = scmp.ge.s32.totalorder %s771, %s754
                %s773 = scalar_select %p772, 0, %s771
                %s774 = smul.u32 %s773, 24
                %s775 = smul.u32 %s773, 24
                %s776 = scalar_lea.vmem %s734, %s774 [#allocation3]
                %s777 = scalar_lea.vmem %s745, %s775
              $region69: #{_encoder_call.1} parent=63 // loop_footer
                %s759 = sadd.s32 %s757, 1
              $region70: #{_encoder_call.1} parent=63 // loop_footer_branch
                %756 = sbr.rel target = $region66
              $region71: #{_encoder_call.1} parent=63 // loop_exit
                _
              %s778 = sdiv.u32.pop %s741, 3
              %s779 = srem.u32.pop %s741, 3
              %s780 = smul.u32 %s778, 3
              %s781 = smul.u32 8, %s780
              %s782 = scalar_lea.vmem %s734, %s781 [#allocation3]
              %s783 = smul.u32 8, %s780
              %s784 = scalar_lea.vmem %s745, %s783
              // While loop
              $region72: #{_encoder_call.1} parent=63 // loop_pre_header
                _
              $region73: #{_encoder_call.1} parent=63 // loop_header
                %s786 = sphi 0, %s788
                %p787 = scmp.ge.s32.totalorder %s786, %s779
                %s791 = sphi 0, %s798
                %s792 = sphi %s782, %s801
                %s793 = sphi %s784, %s802
              $region74: #{_encoder_call.1} parent=63 // loop_header_branch
                %790 = sbr.rel (%p787) target = $region78
              $region75: #{_encoder_call.1} parent=63 // loop_body
                %v794 = vld [vmem:[%s792] sm:$0xff]
                %795 = vst [vmem:[%s793] sm:$0xff] %v794
                %s796 = sadd.s32 1, %s791
                %p797 = scmp.ge.s32.totalorder %s796, %s779
                %s798 = scalar_select %p797, 0, %s796
                %s799 = smul.u32 %s798, 8
                %s800 = smul.u32 %s798, 8
                %s801 = scalar_lea.vmem %s782, %s799 [#allocation3]
                %s802 = scalar_lea.vmem %s784, %s800
              $region76: #{_encoder_call.1} parent=63 // loop_footer
                %s788 = sadd.s32 %s786, 1
              $region77: #{_encoder_call.1} parent=63 // loop_footer_branch
                %785 = sbr.rel target = $region73
              $region78: #{_encoder_call.1} parent=63 // loop_exit
                _
            $region64: #{_encoder_call.1} parent=55 // pred_fallthru
              _
          $region56: #{_encoder_call.1} parent=51 // pred_fallthru
            _
          %856 = vnop
        $region52: #{_encoder_call.1} parent=47 // pred_fallthru
          _
      $region48: #{_encoder_call.1} parent=5 // pred_fallthru
        _
      %p857 = scmp.le.s32.totalorder 2, %s15
      // Predicated region
      $region101: #{_encoder_call.1} parent=5 // pred_check
        %p858 = pneg %p857
      $region102: #{_encoder_call.1} parent=5 // pred_check_branch
        %860 = sbr.rel (%p858) target = $region104
      $region103: #{_encoder_call.1} parent=5 // pred_region
        %s861 = ssub.s32 %s15, 2
        // Predicated region
        $region105: #{_encoder_call.1} parent=103 // pred_check
          %p862 = pneg %p196
        $region106: #{_encoder_call.1} parent=103 // pred_check_branch
          %864 = sbr.rel (%p862) target = $region108
        $region107: #{_encoder_call.1} parent=103 // pred_region
          %s865 = sand.u32 %s181, 1
          %s866 = sand.u32 %s181, 1
          %s867 = smul.addr %s866, 24
          %s868 = scalar_lea.vmem [#allocation3], %s867
        $region108: #{_encoder_call.1} parent=103 // pred_fallthru
          _
      $region104: #{_encoder_call.1} parent=5 // pred_fallthru
        _
    $region6: #{_encoder_call.1} parent=1 // loop_footer
      %s19 = sadd.s32 1, %s15
    $region7: #{_encoder_call.1} parent=1 // loop_footer_branch
      %14 = sbr.rel target = $region3
    $region8: #{_encoder_call.1} parent=1 // loop_exit
      _

// kernel: _encoder_call.1
$region0: #{_encoder_call.1}
  #allocation0 [shape = 'u32[]', space=smem, size = 0x4, offset = 0x4, fixed_abs, tag = 'smem constant byte address 0x4 - core index']
  #allocation1 [shape = 'u32[144,128]{1,0:T(1,128)}', space=vmem, size = 0x12000, scoped, tag = 'internal scratch']
  #allocation2 [shape = 'f32[1,1]{1,0:T(1,128)S(1)}', space=vmem, size = 0x200, scoped, tag = 'scoped memory for _encoder_call.1']
  %s0 = inlined_call_operand.vmem [shape: f32[40,200], index: 0, kind: input, shape index: {}]
  %s1 = inlined_call_operand.vmem [shape: bf16[200,128], index: 1, kind: input, shape index: {}]
  %s2 = inlined_call_operand.vmem [shape: f32[1,128], index: 2, kind: input, shape index: {}]
  %s3 = inlined_call_operand.vmem [shape: bf16[128,128], index: 3, kind: input, shape index: {}]
  %s4 = inlined_call_operand.vmem [shape: f32[1,128], index: 4, kind: input, shape index: {}]
  %s5 = inlined_call_operand.vmem [shape: f32[1,128], index: 5, kind: input, shape index: {}]
  %s6 = inlined_call_operand.<no memory space> [shape: f32[1,1], index: 6, kind: input, shape index: {}]
  %s7 = inlined_call_operand.vmem [shape: f32[40,1], index: 7, kind: output, shape index: {}]
  %s8 = sld [smem:[#allocation0]]
  $region109: #{_encoder_call.1} parent=0
    _
  %s10 = ssub.s32 1, %s8
  %s11 = scalar_select 0, %s10, %s8
  %v12 = vstv %s6
  %13 = vst [vmem:[#allocation2] sm:$0x1] %v12
  $region1: #{_encoder_call.1} parent=0
    #allocation3 [shape = 'u8[24576]{0}', space=vmem, size = 0x6000, scoped, tag = 'output window, operand 0']
    loop: start=0, step=1, limit=4
    $region2: #{_encoder_call.1} parent=1 // loop_pre_header
      _
    $region3: #{_encoder_call.1} parent=1 // loop_header
      %s15 = sphi 0, %s19
      %p16 = scmp.ge.s32.totalorder %s15, 4
      %s25 = sphi 0, %s27
      %s28 = sphi 0, %s25
      %s29 = sphi 0, %s28
      %s45 = sphi 0, %s29
      %s49 = sphi 0, %s49
      %s51 = sphi 0, %s49
      %s52 = sphi 0, %s51
      %s66 = sphi 0, %s52
      %s70 = sphi 0, %s70
      %s72 = sphi 0, %s70
      %s73 = sphi 0, %s72
      %s87 = sphi 0, %s73
      %s91 = sphi 0, %s91
      %s93 = sphi 0, %s91
      %s94 = sphi 0, %s93
      %s108 = sphi 0, %s94
      %s112 = sphi 0, %s112
      %s114 = sphi 0, %s112
      %s115 = sphi 0, %s114
      %s129 = sphi 0, %s115
      %s133 = sphi 0, %s133
      %s135 = sphi 0, %s133
      %s136 = sphi 0, %s135
      %s150 = sphi 0, %s136
      %s154 = sphi 0, %s154
      %s156 = sphi 0, %s154
      %s157 = sphi 0, %s156
      %s171 = sphi 0, %s157
      %s177 = sphi 0, %s179
      %s180 = sphi 0, %s177
      %s181 = sphi 0, %s180
      %s197 = sphi 0, %s181
    $region4: #{_encoder_call.1} parent=1 // loop_header_branch
      %18 = sbr.rel (%p16) target = $region8
    $region5: #{_encoder_call.1} parent=1 // loop_body
      %s20 = ssub.s32 %s15, 1
      %s21 = ssub.s32 %s15, 2
      %s22 = sadd.s32 %s15, 1
      %s23 = ssub.s32 %s15, %s22
      %p24 = scmp.eq.s32.totalorder %s23, 0
      %s26 = sadd.s32 %s25, 1
      %s27 = scalar_select %p24, %s25, %s26
      %p30 = pneg %p24
      %p31 = scmp.eq.s32.totalorder %s15, 1
      %p32 = por %p30, %p31
      %p33 = scmp.ne.s32.totalorder %s25, %s28
      %p34 = scmp.eq.s32.totalorder %s15, 0
      %p35 = por %p33, %p34
      %p36 = scmp.ne.s32.totalorder %s25, %s28
      %p37 = scmp.eq.s32.totalorder %s20, 1
      %p38 = por %p36, %p37
      %p39 = scmp.ne.s32.totalorder %s28, %s29
      %p40 = scmp.eq.s32.totalorder %s20, 0
      %p41 = por %p39, %p40
      %p42 = scmp.ne.s32.totalorder %s28, %s29
      %p43 = scmp.eq.s32.totalorder %s21, 1
      %p44 = por %p42, %p43
      %p46 = scmp.ne.s32.totalorder %s29, %s45
      %p47 = scmp.eq.s32.totalorder %s21, 0
      %p48 = por %p46, %p47
      %s50 = sadd.s32 %s49, 1
      %p53 = scmp.eq.s32.totalorder %s15, 1
      %p54 = scmp.ne.s32.totalorder %s49, %s51
      %p55 = scmp.eq.s32.totalorder %s15, 0
      %p56 = por %p54, %p55
      %p57 = scmp.ne.s32.totalorder %s49, %s51
      %p58 = scmp.eq.s32.totalorder %s20, 1
      %p59 = por %p57, %p58
      %p60 = scmp.ne.s32.totalorder %s51, %s52
      %p61 = scmp.eq.s32.totalorder %s20, 0
      %p62 = por %p60, %p61
      %p63 = scmp.ne.s32.totalorder %s51, %s52
      %p64 = scmp.eq.s32.totalorder %s21, 1
      %p65 = por %p63, %p64
      %p67 = scmp.ne.s32.totalorder %s52, %s66
      %p68 = scmp.eq.s32.totalorder %s21, 0
      %p69 = por %p67, %p68
      %s71 = sadd.s32 %s70, 1
      %p74 = scmp.eq.s32.totalorder %s15, 1
      %p75 = scmp.ne.s32.totalorder %s70, %s72
      %p76 = scmp.eq.s32.totalorder %s15, 0
      %p77 = por %p75, %p76
      %p78 = scmp.ne.s32.totalorder %s70, %s72
      %p79 = scmp.eq.s32.totalorder %s20, 1
      %p80 = por %p78, %p79
      %p81 = scmp.ne.s32.totalorder %s72, %s73
      %p82 = scmp.eq.s32.totalorder %s20, 0
      %p83 = por %p81, %p82
      %p84 = scmp.ne.s32.totalorder %s72, %s73
      %p85 = scmp.eq.s32.totalorder %s21, 1
      %p86 = por %p84, %p85
      %p88 = scmp.ne.s32.totalorder %s73, %s87
      %p89 = scmp.eq.s32.totalorder %s21, 0
      %p90 = por %p88, %p89
      %s92 = sadd.s32 %s91, 1
      %p95 = scmp.eq.s32.totalorder %s15, 1
      %p96 = scmp.ne.s32.totalorder %s91, %s93
      %p97 = scmp.eq.s32.totalorder %s15, 0
      %p98 = por %p96, %p97
      %p99 = scmp.ne.s32.totalorder %s91, %s93
      %p100 = scmp.eq.s32.totalorder %s20, 1
      %p101 = por %p99, %p100
      %p102 = scmp.ne.s32.totalorder %s93, %s94
      %p103 = scmp.eq.s32.totalorder %s20, 0
      %p104 = por %p102, %p103
      %p105 = scmp.ne.s32.totalorder %s93, %s94
      %p106 = scmp.eq.s32.totalorder %s21, 1
      %p107 = por %p105, %p106
      %p109 = scmp.ne.s32.totalorder %s94, %s108
      %p110 = scmp.eq.s32.totalorder %s21, 0
      %p111 = por %p109, %p110
      %s113 = sadd.s32 %s112, 1
      %p116 = scmp.eq.s32.totalorder %s15, 1
      %p117 = scmp.ne.s32.totalorder %s112, %s114
      %p118 = scmp.eq.s32.totalorder %s15, 0
      %p119 = por %p117, %p118
      %p120 = scmp.ne.s32.totalorder %s112, %s114
      %p121 = scmp.eq.s32.totalorder %s20, 1
      %p122 = por %p120, %p121
      %p123 = scmp.ne.s32.totalorder %s114, %s115
      %p124 = scmp.eq.s32.totalorder %s20, 0
      %p125 = por %p123, %p124
      %p126 = scmp.ne.s32.totalorder %s114, %s115
      %p127 = scmp.eq.s32.totalorder %s21, 1
      %p128 = por %p126, %p127
      %p130 = scmp.ne.s32.totalorder %s115, %s129
      %p131 = scmp.eq.s32.totalorder %s21, 0
      %p132 = por %p130, %p131
      %s134 = sadd.s32 %s133, 1
      %p137 = scmp.eq.s32.totalorder %s15, 1
      %p138 = scmp.ne.s32.totalorder %s133, %s135
      %p139 = scmp.eq.s32.totalorder %s15, 0
      %p140 = por %p138, %p139
      %p141 = scmp.ne.s32.totalorder %s133, %s135
      %p142 = scmp.eq.s32.totalorder %s20, 1
      %p143 = por %p141, %p142
      %p144 = scmp.ne.s32.totalorder %s135, %s136
      %p145 = scmp.eq.s32.totalorder %s20, 0
      %p146 = por %p144, %p145
      %p147 = scmp.ne.s32.totalorder %s135, %s136
      %p148 = scmp.eq.s32.totalorder %s21, 1
      %p149 = por %p147, %p148
      %p151 = scmp.ne.s32.totalorder %s136, %s150
      %p152 = scmp.eq.s32.totalorder %s21, 0
      %p153 = por %p151, %p152
      %s155 = sadd.s32 %s154, 1
      %p158 = scmp.eq.s32.totalorder %s15, 1
      %p159 = scmp.ne.s32.totalorder %s154, %s156
      %p160 = scmp.eq.s32.totalorder %s15, 0
      %p161 = por %p159, %p160
      %p162 = scmp.ne.s32.totalorder %s154, %s156
      %p163 = scmp.eq.s32.totalorder %s20, 1
      %p164 = por %p162, %p163
      %p165 = scmp.ne.s32.totalorder %s156, %s157
      %p166 = scmp.eq.s32.totalorder %s20, 0
      %p167 = por %p165, %p166
      %p168 = scmp.ne.s32.totalorder %s156, %s157
      %p169 = scmp.eq.s32.totalorder %s21, 1
      %p170 = por %p168, %p169
      %p172 = scmp.ne.s32.totalorder %s157, %s171
      %p173 = scmp.eq.s32.totalorder %s21, 0
      %p174 = por %p172, %p173
      %s175 = ssub.s32 %s15, %s22
      %p176 = scmp.eq.s32.totalorder %s175, 0
      %s178 = sadd.s32 %s177, 1
      %s179 = scalar_select %p176, %s177, %s178
      %p182 = pneg %p176
      %p183 = scmp.eq.s32.totalorder %s15, 1
      %p184 = por %p182, %p183
      %p185 = scmp.ne.s32.totalorder %s177, %s180
      %p186 = scmp.eq.s32.totalorder %s15, 0
      %p187 = por %p185, %p186
      %p188 = scmp.ne.s32.totalorder %s177, %s180
      %p189 = scmp.eq.s32.totalorder %s20, 1
      %p190 = por %p188, %p189
      %p191 = scmp.ne.s32.totalorder %s180, %s181
      %p192 = scmp.eq.s32.totalorder %s20, 0
      %p193 = por %p191, %p192
      %p194 = scmp.ne.s32.totalorder %s180, %s181
      %p195 = scmp.eq.s32.totalorder %s21, 1
      %p196 = por %p194, %p195
      %p198 = scmp.ne.s32.totalorder %s181, %s197
      %p199 = scmp.eq.s32.totalorder %s21, 0
      %p200 = por %p198, %p199
      %p201 = scmp.le.s32.totalorder 1, %s15
      %p202 = scmp.lt.s32.totalorder %s15, 3
      %p203 = pnand %p201, %p202
      %p204 = pneg %p203
      // Predicated region
      $region9: #{_encoder_call.1} parent=5 // pred_check
        _
      $region10: #{_encoder_call.1} parent=5 // pred_check_branch
        %206 = sbr.rel (%p203) target = $region12
      $region11: #{_encoder_call.1} parent=5 // pred_region
        %s207 = ssub.s32 %s15, 1
        // Predicated region
        $region13: #{_encoder_call.1} parent=11 // pred_check
          %p208 = pneg %p62
        $region14: #{_encoder_call.1} parent=11 // pred_check_branch
          %210 = sbr.rel (%p208) target = $region16
        $region15: #{_encoder_call.1} parent=11 // pred_region
          _
        $region16: #{_encoder_call.1} parent=11 // pred_fallthru
          _
        // Predicated region
        $region17: #{_encoder_call.1} parent=11 // pred_check
          %p211 = pneg %p83
        $region18: #{_encoder_call.1} parent=11 // pred_check_branch
          %213 = sbr.rel (%p211) target = $region20
        $region19: #{_encoder_call.1} parent=11 // pred_region
          _
        $region20: #{_encoder_call.1} parent=11 // pred_fallthru
          _
        // Predicated region
        $region21: #{_encoder_call.1} parent=11 // pred_check
          %p214 = pneg %p104
        $region22: #{_encoder_call.1} parent=11 // pred_check_branch
          %216 = sbr.rel (%p214) target = $region24
        $region23: #{_encoder_call.1} parent=11 // pred_region
          _
        $region24: #{_encoder_call.1} parent=11 // pred_fallthru
          _
        // Predicated region
        $region25: #{_encoder_call.1} parent=11 // pred_check
          %p217 = pneg %p125
        $region26: #{_encoder_call.1} parent=11 // pred_check_branch
          %219 = sbr.rel (%p217) target = $region28
        $region27: #{_encoder_call.1} parent=11 // pred_region
          _
        $region28: #{_encoder_call.1} parent=11 // pred_fallthru
          _
        // Predicated region
        $region29: #{_encoder_call.1} parent=11 // pred_check
          %p220 = pneg %p146
        $region30: #{_encoder_call.1} parent=11 // pred_check_branch
          %222 = sbr.rel (%p220) target = $region32
        $region31: #{_encoder_call.1} parent=11 // pred_region
          _
        $region32: #{_encoder_call.1} parent=11 // pred_fallthru
          _
        // Predicated region
        $region33: #{_encoder_call.1} parent=11 // pred_check
          %p223 = pneg %p167
        $region34: #{_encoder_call.1} parent=11 // pred_check_branch
          %225 = sbr.rel (%p223) target = $region36
        $region35: #{_encoder_call.1} parent=11 // pred_region
          _
        $region36: #{_encoder_call.1} parent=11 // pred_fallthru
          _
      $region12: #{_encoder_call.1} parent=5 // pred_fallthru
        _
      %p226 = scmp.lt.s32.totalorder %s15, 2
      // Predicated region
      $region37: #{_encoder_call.1} parent=5 // pred_check
        %p227 = pneg %p226
      $region38: #{_encoder_call.1} parent=5 // pred_check_branch
        %229 = sbr.rel (%p227) target = $region40
      $region39: #{_encoder_call.1} parent=5 // pred_region
        // Predicated region
        $region41: #{_encoder_call.1} parent=39 // pred_check
          %p230 = pneg %p35
        $region42: #{_encoder_call.1} parent=39 // pred_check_branch
          %232 = sbr.rel (%p230) target = $region44
        $region43: #{_encoder_call.1} parent=39 // pred_region
          %s233 = smul.u32 3, %s15
          %s234 = ssub.s32 5, %s233
          %p235 = scmp.lt.s32.totalorder %s234, 3
          %s236 = scalar_select %p235, %s234, 3
          %s237 = smul.u32 128, %s236
          %s238 = smul.u32 %s237, 2
          %p239 = scmp.lt.s32.totalorder %s233, 4
          %s240 = scalar_select %p239, %s233, 4
          %s241 = smul.addr %s240, 2
          %s242 = smul.addr %s241, 8
          %s243 = scalar_lea.vmem %s0, %s242
          %s244 = smul.u32 3, %s15
          %s245 = ssub.s32 5, %s244
          %p246 = scmp.lt.s32.totalorder %s245, 3
          %s247 = scalar_select %p246, %s245, 3
          %s248 = smul.u32 128, %s247
          %s249 = smul.u32 %s248, 2
        $region44: #{_encoder_call.1} parent=39 // pred_fallthru
          _
      $region40: #{_encoder_call.1} parent=5 // pred_fallthru
        _
      %p250 = scmp.le.s32.totalorder 1, %s15
      %p251 = scmp.lt.s32.totalorder %s15, 3
      %p252 = pnand %p250, %p251
      %p253 = pneg %p252
      // Predicated region
      $region45: #{_encoder_call.1} parent=5 // pred_check
        _
      $region46: #{_encoder_call.1} parent=5 // pred_check_branch
        %255 = sbr.rel (%p252) target = $region48
      $region47: #{_encoder_call.1} parent=5 // pred_region
        %s256 = ssub.s32 %s15, 1
        %s257 = smul.u32 3, %s20
        %s258 = ssub.s32 5, %s257
        %p259 = scmp.lt.s32.totalorder %s258, 3
        %s260 = scalar_select %p259, %s258, 3
        %s261 = smul.u32 128, %s260
        %s262 = smul.u32 %s261, 2
        %p263 = scmp.lt.s32.totalorder %s257, 4
        %s264 = scalar_select %p263, %s257, 4
        %s265 = smul.addr %s264, 2
        %s266 = smul.addr %s265, 8
        %s267 = scalar_lea.vmem %s0, %s266
        %p268 = pneg %p41
        %p269 = pneg %p38
        %p270 = pneg %p62
        %p271 = pneg %p59
        %p272 = pneg %p83
        %p273 = pneg %p80
        %p274 = pneg %p104
        %p275 = pneg %p101
        %p276 = pneg %p125
        %p277 = pneg %p122
        %p278 = pneg %p146
        %p279 = pneg %p143
        %p280 = pneg %p167
        %p281 = pneg %p164
        %p282 = pneg %p193
        %p283 = pneg %p190
        %s284 = sand.u32 %s180, 1
        %s285 = sand.u32 %s180, 1
        %s286 = smul.addr %s285, 24
        %s287 = scalar_lea.vmem [#allocation3], %s286
        %s288 = smul.u32 3, %s20
        %s289 = ssub.s32 5, %s288
        %p290 = scmp.lt.s32.totalorder %s289, 3
        %s291 = scalar_select %p290, %s289, 3
        %s292 = smul.u32 128, %s291
        %s293 = smul.u32 %s292, 2
        %p294 = scmp.lt.s32.totalorder %s288, 4
        %s295 = scalar_select %p294, %s288, 4
        %s296 = smul.addr %s295, 2
        %s297 = smul.addr %s296, 8
        %s298 = scalar_lea.vmem %s0, %s297
        %s299 = smul.u32 3, %s20
        %s300 = ssub.s32 5, %s299
        %p301 = scmp.lt.s32.totalorder %s300, 3
        %s302 = scalar_select %p301, %s300, 3
        %s303 = smul.u32 128, %s302
        %s304 = smul.u32 %s303, 2
        %s305 = smul.u32 3, %s20
        %s306 = ssub.s32 5, %s305
        %p307 = scmp.lt.s32.totalorder %s306, 3
        %s308 = scalar_select %p307, %s306, 3
        %s309 = smul.u32 128, %s308
        %v311 = vld [vmem:[%s298] sm:$0xff]
        %v312 = vld [vmem:[%s298 + $0x8] sm:$0xff]
        %v313 = vld [vmem:[%s298 + $0x10] sm:$0xff]
        %v314 = vld [vmem:[%s298 + $0x18] sm:$0xff]
        %v315 = vld [vmem:[%s298 + $0x20] sm:$0xff]
        %v316 = vld [vmem:[%s298 + $0x28] sm:$0xff]
        %v317 = vpack.c.bf16 %v313, %v311
        %v318 = vpack.c.bf16 %v314, %v312
        %v319 = vpack.c.bf16 %v315, %v315
        %v320 = vpack.c.bf16 %v316, %v316
        %v321 = vld [vmem:[%s1] sm:$0xf]
        %v322 = vld [vmem:[%s1 + $0x4] sm:$0xf]
        %v323 = vld [vmem:[%s1 + $0x8] sm:$0xf]
        %v324 = vld [vmem:[%s1 + $0xc] sm:$0xf]
        %v325 = vld [vmem:[%s1 + $0x10] sm:$0xf]
        %v326 = vld [vmem:[%s1 + $0x14] sm:$0xf]
        %v327 = vld [vmem:[%s1 + $0x18] sm:$0xf]
        %v328 = vld [vmem:[%s1 + $0x1c] sm:$0xf]
        %v329 = vld [vmem:[%s1 + $0x20] sm:$0xf]
        %v330 = vld [vmem:[%s1 + $0x24] sm:$0xf]
        %v331 = vld [vmem:[%s1 + $0x28] sm:$0xf]
        %v332 = vld [vmem:[%s1 + $0x2c] sm:$0xf]
        %v333 = vld [vmem:[%s1 + $0x30] sm:$0xf]
        %v334 = vld [vmem:[%s1 + $0x34] sm:$0xf]
        %v335 = vld [vmem:[%s1 + $0x38] sm:$0xf]
        %v336 = vld [vmem:[%s1 + $0x3c] sm:$0xf]
        %v337 = vld [vmem:[%s1 + $0x40] sm:$0xf]
        %v338 = vld [vmem:[%s1 + $0x44] sm:$0xf]
        %v339 = vld [vmem:[%s1 + $0x48] sm:$0xf]
        %v340 = vld [vmem:[%s1 + $0x4c] sm:$0xf]
        %v341 = vld [vmem:[%s1 + $0x50] sm:$0xf]
        %v342 = vld [vmem:[%s1 + $0x54] sm:$0xf]
        %v343 = vld [vmem:[%s1 + $0x58] sm:$0xf]
        %v344 = vld [vmem:[%s1 + $0x5c] sm:$0xf]
        %v345 = vld [vmem:[%s1 + $0x60] sm:$0xf]
        %v346 = vld [vmem:[%s2] sm:$0x1]
        %v348 = vlaneseq
        %v349 = vshrl.u32 %v348, 7
        %v350 = vsub.s32 0, %v349
        %v351 = vrot.slane %v346, %v350
        %v378 = vunpack.c.l.b16 %v321
        %v379 = vunpack.c.l.b16 %v322
        %v380 = vunpack.c.l.b16 %v323
        %v381 = vunpack.c.l.b16 %v324
        %v382 = vunpack.c.l.b16 %v325
        %v383 = vunpack.c.l.b16 %v326
        %v384 = vunpack.c.l.b16 %v327
        %v385 = vunpack.c.l.b16 %v328
        %v386 = vunpack.c.l.b16 %v329
        %v387 = vunpack.c.l.b16 %v330
        %v388 = vunpack.c.l.b16 %v331
        %v389 = vunpack.c.l.b16 %v332
        %v390 = vunpack.c.l.b16 %v333
        %v391 = vunpack.c.l.b16 %v334
        %v392 = vunpack.c.l.b16 %v335
        %v393 = vunpack.c.l.b16 %v336
        %v394 = vunpack.c.l.b16 %v337
        %v395 = vunpack.c.l.b16 %v338
        %v396 = vunpack.c.l.b16 %v339
        %v397 = vunpack.c.l.b16 %v340
        %v398 = vunpack.c.l.b16 %v341
        %v399 = vunpack.c.l.b16 %v342
        %v400 = vunpack.c.l.b16 %v343
        %v401 = vunpack.c.l.b16 %v344
        %v402 = vunpack.c.l.b16 %v345
        %v403 = vpack.c.b16 %v379, %v378
        %v404 = vpack.c.b16 %v381, %v380
        %v405 = vpack.c.b16 %v383, %v382
        %v406 = vpack.c.b16 %v385, %v384
        %v407 = vpack.c.b16 %v387, %v386
        %v408 = vpack.c.b16 %v389, %v388
        %v409 = vpack.c.b16 %v391, %v390
        %v410 = vpack.c.b16 %v393, %v392
        %v411 = vpack.c.b16 %v395, %v394
        %v412 = vpack.c.b16 %v397, %v396
        %v413 = vpack.c.b16 %v399, %v398
        %v414 = vpack.c.b16 %v401, %v400
        %v415 = vpack.c.b16 %v402, %v402
        %vm428 = vcmask 588800
        %v430 = vsel %vm428, %v318, 0
        %v433 = vsel %vm428, %v320, 0
        %vm435 = vcmask 1043456
        %v437 = vsel %vm435, %v415, 0
        %439 = vmatprep.subr.bf16.mxu0 0
        %440 = vmatpush1.bf16.msra.mxu0 %v403
        %441 = vmatprep.subr.bf16.mxu0 0
        %442 = vmatpush1.bf16.msra.mxu0 %v404
        %443 = vmatprep.subr.bf16.mxu0 0
        %444 = vmatpush1.bf16.msra.mxu0 %v405
        %445 = vmatprep.subr.bf16.mxu0 0
        %446 = vmatpush1.bf16.msra.mxu0 %v406
        %447 = vmatprep.subr.bf16.mxu0 0
        %448 = vmatpush1.bf16.msra.mxu0 %v407
        %449 = vmatprep.subr.bf16.mxu0 0
        %450 = vmatpush1.bf16.msra.mxu0 %v408
        %451 = vmatprep.subr.bf16.mxu0 0
        %452 = vmatpush1.bf16.msra.mxu0 %v409
        %453 = vmatprep.subr.bf16.mxu0 0
        %454 = vmatpush1.bf16.msra.mxu0 %v410
        %455 = vmatprep.subr.bf16.mxu0 0
        %456 = vmatpush1.bf16.msra.mxu0 %v411
        %457 = vmatprep.subr.bf16.mxu0 0
        %458 = vmatpush1.bf16.msra.mxu0 %v412
        %459 = vmatprep.subr.bf16.mxu0 0
        %460 = vmatpush1.bf16.msra.mxu0 %v413
        %461 = vmatprep.subr.bf16.mxu0 0
        %462 = vmatpush1.bf16.msra.mxu0 %v414
        %463 = vmatprep.subr.bf16.mxu0 0
        %464 = vmatpush1.bf16.msra.mxu0 %v437
        %465 = vmatprep.subr.bf16.mxu0 0
        %466 = vmatpush1.bf16.msra.mxu0 0
        %467 = vmatprep.subr.bf16.mxu0 0
        %468 = vmatpush1.bf16.msra.mxu0 0
        %469 = vmatprep.subr.bf16.mxu0 0
        %470 = vmatpush1.bf16.msra.mxu0 0
        %471 = vmatprep.mubr.bf16.mxu0 %v430
        %472 = vmatmul.mubr.bf16.gmra.mrb[0].mxu0 %v317
        %v473 = vpop.f32.mrb[0].mxu0
        %v474 = vadd.f32 %v351, %v473
        %v475 = vpop.f32.mrb[0].mxu0
        %v476 = vpop.f32.mrb[0].mxu0
        %v477 = vadd.f32 %v351, %v476
        %v478 = vpop.f32.mrb[0].mxu0
        %479 = vmatprep.mubr.bf16.mxu0 %v433
        %480 = vmatmul.mubr.bf16.gmra.mrb[0].mxu0 %v319
        %v481 = vpop.f32.mrb[0].mxu0
        %v482 = vadd.f32 %v351, %v481
        %v483 = vpop.f32.mrb[0].mxu0
        %v484 = vpop.f32.mrb[0].mxu0
        %v485 = vpop.f32.mrb[0].mxu0
        %486 = vdwg.mxu0
        %487 = vadd.xlane.f32.xlu0 %v474
        %v488 = vpop.xlane.xlu0 %487
        %489 = vadd.xlane.f32.xlu0 %v477
        %v490 = vpop.xlane.xlu0 %489
        %491 = vadd.xlane.f32.xlu0 %v482
        %v492 = vpop.xlane.xlu0 %491
        %v493 = vmul.f32 %v488, 0.0078125
        %v494 = vmul.f32 %v490, 0.0078125
        %v495 = vmul.f32 %v492, 0.0078125
        %v496 = vsub.f32 %v474, %v493
        %v497 = vsub.f32 %v477, %v494
        %v498 = vsub.f32 %v482, %v495
        %v499 = vmul.f32 %v496, %v496
        %v500 = vmul.f32 %v497, %v497
        %v501 = vmul.f32 %v498, %v498
        %502 = vadd.xlane.f32.xlu0 %v499
        %v503 = vpop.xlane.xlu0 %502
        %504 = vadd.xlane.f32.xlu0 %v500
        %v505 = vpop.xlane.xlu0 %504
        %506 = vadd.xlane.f32.xlu0 %v501
        %v507 = vpop.xlane.xlu0 %506
        %v508 = vmul.f32 %v503, 0.0078125
        %v509 = vmul.f32 %v505, 0.0078125
        %v510 = vmul.f32 %v507, 0.0078125
        %v511 = vadd.f32 %v508, 1e-05
        %v512 = vadd.f32 %v509, 1e-05
        %v513 = vadd.f32 %v510, 1e-05
        %v514 = vrsqrt.pop %v511
        %v515 = vrsqrt.pop %v512
        %v516 = vrsqrt.pop %v513
        %v517 = vmul.f32 %v496, %v514
        %v518 = vmul.f32 %v497, %v515
        %v519 = vmul.f32 %v498, %v516
        %vm520 = vcmp.ge.f32.partialorder %v517, 0.0
        %vm521 = vcmp.ge.f32.partialorder %v518, 0.0
        %vm522 = vcmp.ge.f32.partialorder %v519, 0.0
        %v523 = vmul.f32 %v517, 0.01
        %v524 = vmul.f32 %v518, 0.01
        %v525 = vmul.f32 %v519, 0.01
        %v526 = vsel %vm520, %v517, %v523
        %v527 = vsel %vm521, %v518, %v524
        %v528 = vsel %vm522, %v519, %v525
        %v529 = vpack.c.bf16 %v527, %v526
        %v530 = vpack.c.bf16 %v528, %v528
        %v531 = vld [vmem:[%s3] sm:$0xf]
        %v532 = vld [vmem:[%s3 + $0x4] sm:$0xf]
        %v533 = vld [vmem:[%s3 + $0x8] sm:$0xf]
        %v534 = vld [vmem:[%s3 + $0xc] sm:$0xf]
        %v535 = vld [vmem:[%s3 + $0x10] sm:$0xf]
        %v536 = vld [vmem:[%s3 + $0x14] sm:$0xf]
        %v537 = vld [vmem:[%s3 + $0x18] sm:$0xf]
        %v538 = vld [vmem:[%s3 + $0x1c] sm:$0xf]
        %v539 = vld [vmem:[%s3 + $0x20] sm:$0xf]
        %v540 = vld [vmem:[%s3 + $0x24] sm:$0xf]
        %v541 = vld [vmem:[%s3 + $0x28] sm:$0xf]
        %v542 = vld [vmem:[%s3 + $0x2c] sm:$0xf]
        %v543 = vld [vmem:[%s3 + $0x30] sm:$0xf]
        %v544 = vld [vmem:[%s3 + $0x34] sm:$0xf]
        %v545 = vld [vmem:[%s3 + $0x38] sm:$0xf]
        %v546 = vld [vmem:[%s3 + $0x3c] sm:$0xf]
        %v547 = vld [vmem:[%s4] sm:$0x1]
        %v549 = vlaneseq
        %v550 = vshrl.u32 %v549, 7
        %v551 = vsub.s32 0, %v550
        %v552 = vrot.slane %v547, %v551
        %v570 = vunpack.c.l.b16 %v531
        %v571 = vunpack.c.l.b16 %v532
        %v572 = vunpack.c.l.b16 %v533
        %v573 = vunpack.c.l.b16 %v534
        %v574 = vunpack.c.l.b16 %v535
        %v575 = vunpack.c.l.b16 %v536
        %v576 = vunpack.c.l.b16 %v537
        %v577 = vunpack.c.l.b16 %v538
        %v578 = vunpack.c.l.b16 %v539
        %v579 = vunpack.c.l.b16 %v540
        %v580 = vunpack.c.l.b16 %v541
        %v581 = vunpack.c.l.b16 %v542
        %v582 = vunpack.c.l.b16 %v543
        %v583 = vunpack.c.l.b16 %v544
        %v584 = vunpack.c.l.b16 %v545
        %v585 = vunpack.c.l.b16 %v546
        %v586 = vpack.c.b16 %v571, %v570
        %v587 = vpack.c.b16 %v573, %v572
        %v588 = vpack.c.b16 %v575, %v574
        %v589 = vpack.c.b16 %v577, %v576
        %v590 = vpack.c.b16 %v579, %v578
        %v591 = vpack.c.b16 %v581, %v580
        %v592 = vpack.c.b16 %v583, %v582
        %v593 = vpack.c.b16 %v585, %v584
        %602 = vmatprep.subr.bf16.mxu0 0
        %603 = vmatpush1.bf16.msra.mxu0 %v586
        %604 = vmatprep.subr.bf16.mxu0 0
        %605 = vmatpush1.bf16.msra.mxu0 %v587
        %606 = vmatprep.subr.bf16.mxu0 0
        %607 = vmatpush1.bf16.msra.mxu0 %v588
        %608 = vmatprep.subr.bf16.mxu0 0
        %609 = vmatpush1.bf16.msra.mxu0 %v589
        %610 = vmatprep.subr.bf16.mxu0 0
        %611 = vmatpush1.bf16.msra.mxu0 %v590
        %612 = vmatprep.subr.bf16.mxu0 0
        %613 = vmatpush1.bf16.msra.mxu0 %v591
        %614 = vmatprep.subr.bf16.mxu0 0
        %615 = vmatpush1.bf16.msra.mxu0 %v592
        %616 = vmatprep.subr.bf16.mxu0 0
        %617 = vmatpush1.bf16.msra.mxu0 %v593
        %618 = vmatprep.subr.bf16.mxu0 0
        %619 = vmatpush1.bf16.msra.mxu0 0
        %620 = vmatprep.subr.bf16.mxu0 0
        %621 = vmatpush1.bf16.msra.mxu0 0
        %622 = vmatprep.subr.bf16.mxu0 0
        %623 = vmatpush1.bf16.msra.mxu0 0
        %624 = vmatprep.subr.bf16.mxu0 0
        %625 = vmatpush1.bf16.msra.mxu0 0
        %626 = vmatprep.subr.bf16.mxu0 0
        %627 = vmatpush1.bf16.msra.mxu0 0
        %628 = vmatprep.subr.bf16.mxu0 0
        %629 = vmatpush1.bf16.msra.mxu0 0
        %630 = vmatprep.subr.bf16.mxu0 0
        %631 = vmatpush1.bf16.msra.mxu0 0
        %632 = vmatprep.subr.bf16.mxu0 0
        %633 = vmatpush1.bf16.msra.mxu0 0
        %634 = vmatprep.mubr.bf16.mxu0 0
        %635 = vmatmul.mubr.bf16.gmra.mrb[0].mxu0 %v529
        %v636 = vpop.f32.mrb[0].mxu0
        %v637 = vadd.f32 %v552, %v636
        %v638 = vpop.f32.mrb[0].mxu0
        %v639 = vpop.f32.mrb[0].mxu0
        %v640 = vadd.f32 %v552, %v639
        %v641 = vpop.f32.mrb[0].mxu0
        %642 = vmatprep.mubr.bf16.mxu0 0
        %643 = vmatmul.mubr.bf16.gmra.mrb[0].mxu0 %v530
        %v644 = vpop.f32.mrb[0].mxu0
        %v645 = vadd.f32 %v552, %v644
        %v646 = vpop.f32.mrb[0].mxu0
        %v647 = vpop.f32.mrb[0].mxu0
        %v648 = vpop.f32.mrb[0].mxu0
        %649 = vdwg.mxu0
        %650 = vadd.xlane.f32.xlu0 %v637
        %v651 = vpop.xlane.xlu0 %650
        %652 = vadd.xlane.f32.xlu0 %v640
        %v653 = vpop.xlane.xlu0 %652
        %654 = vadd.xlane.f32.xlu0 %v645
        %v655 = vpop.xlane.xlu0 %654
        %v656 = vmul.f32 %v651, 0.0078125
        %v657 = vmul.f32 %v653, 0.0078125
        %v658 = vmul.f32 %v655, 0.0078125
        %v659 = vsub.f32 %v637, %v656
        %v660 = vsub.f32 %v640, %v657
        %v661 = vsub.f32 %v645, %v658
        %v662 = vmul.f32 %v659, %v659
        %v663 = vmul.f32 %v660, %v660
        %v664 = vmul.f32 %v661, %v661
        %665 = vadd.xlane.f32.xlu0 %v662
        %v666 = vpop.xlane.xlu0 %665
        %667 = vadd.xlane.f32.xlu0 %v663
        %v668 = vpop.xlane.xlu0 %667
        %669 = vadd.xlane.f32.xlu0 %v664
        %v670 = vpop.xlane.xlu0 %669
        %v671 = vmul.f32 %v666, 0.0078125
        %v672 = vmul.f32 %v668, 0.0078125
        %v673 = vmul.f32 %v670, 0.0078125
        %v674 = vadd.f32 %v671, 1e-05
        %v675 = vadd.f32 %v672, 1e-05
        %v676 = vadd.f32 %v673, 1e-05
        %v677 = vrsqrt.pop %v674
        %v678 = vrsqrt.pop %v675
        %v679 = vrsqrt.pop %v676
        %v680 = vmul.f32 %v659, %v677
        %v681 = vmul.f32 %v660, %v678
        %v682 = vmul.f32 %v661, %v679
        %vm683 = vcmp.ge.f32.partialorder %v680, 0.0
        %vm684 = vcmp.ge.f32.partialorder %v681, 0.0
        %vm685 = vcmp.ge.f32.partialorder %v682, 0.0
        %v686 = vmul.f32 %v680, 0.01
        %v687 = vmul.f32 %v681, 0.01
        %v688 = vmul.f32 %v682, 0.01
        %v689 = vsel %vm683, %v680, %v686
        %v690 = vsel %vm684, %v681, %v687
        %v691 = vsel %vm685, %v682, %v688
        %v692 = vld [vmem:[%s5] sm:$0x1]
        %v694 = vlaneseq
        %v695 = vshrl.u32 %v694, 7
        %v696 = vsub.s32 0, %v695
        %v697 = vrot.slane %v692, %v696
        %v699 = vmul.f32 %v689, %v697
        %v700 = vmul.f32 %v690, %v697
        %v701 = vmul.f32 %v691, %v697
        %702 = vadd.xlane.f32.xlu0 %v699
        %v703 = vpop.xlane.xlu0 %702
        %704 = vadd.xlane.f32.xlu0 %v700
        %v705 = vpop.xlane.xlu0 %704
        %706 = vadd.xlane.f32.xlu0 %v701
        %v707 = vpop.xlane.xlu0 %706
        %v708 = vld [vmem:[#allocation2] sm:$0x1]
        %v710 = vlaneseq
        %v711 = vshrl.u32 %v710, 7
        %v712 = vsub.s32 0, %v711
        %v713 = vrot.slane %v708, %v712
        %v715 = vadd.f32 %v703, %v713
        %v716 = vadd.f32 %v705, %v713
        %v717 = vadd.f32 %v707, %v713
        %vm718 = vcmp.ge.f32.partialorder %v715, 0.0
        %vm719 = vcmp.ge.f32.partialorder %v716, 0.0
        %vm720 = vcmp.ge.f32.partialorder %v717, 0.0
        %v721 = vmul.f32 %v715, 0.01
        %v722 = vmul.f32 %v716, 0.01
        %v723 = vmul.f32 %v717, 0.01
        %v724 = vsel %vm718, %v715, %v721
        %v725 = vsel %vm719, %v716, %v722
        %v726 = vsel %vm720, %v717, %v723
        %vm727 = vcmask 7168
        %728 = vst.msk [vmem:[%s287] sm:$0xff] %vm727, %v724
        %729 = vst.msk [vmem:[%s287 + $0x8] sm:$0xff] %vm727, %v725
        %730 = vst.msk [vmem:[%s287 + $0x10] sm:$0xff] %vm727, %v726
        %s731 = sand.u32 %s180, 1
        %s732 = sand.u32 %s180, 1
        %s733 = smul.addr %s732, 24
        %s734 = scalar_lea.vmem [#allocation3], %s733
        // Predicated region
        $region49: #{_encoder_call.1} parent=47 // pred_check
          %p735 = pneg %p190
        $region50: #{_encoder_call.1} parent=47 // pred_check_branch
          %737 = sbr.rel (%p735) target = $region52
        $region51: #{_encoder_call.1} parent=47 // pred_region
          %s738 = smul.u32 3, %s20
          %s739 = ssub.s32 5, %s738
          %p740 = scmp.lt.s32.totalorder %s739, 3
          %s741 = scalar_select %p740, %s739, 3
          %s742 = smul.u32 128, %s741
          %p743 = scmp.ne.s32.totalorder 0, %s742
          %s744 = smul.addr %s738, 8
          %s745 = scalar_lea.vmem %s7, %s744
          // Predicated region
          $region53: #{_encoder_call.1} parent=51 // pred_check
            %p746 = pneg %p743
          $region54: #{_encoder_call.1} parent=51 // pred_check_branch
            %748 = sbr.rel (%p746) target = $region56
          $region55: #{_encoder_call.1} parent=51 // pred_region
            // Predicated region
            $region57: #{_encoder_call.1} parent=55 // pred_check
              _
            $region58: #{_encoder_call.1} parent=55 // pred_check_branch
              %750 = sbr.rel (0) target = $region60
            $region59: #{_encoder_call.1} parent=55 // pred_region
              // Predicated region
              $region79: #{_encoder_call.1} parent=59 // pred_check
                _
              $region80: #{_encoder_call.1} parent=59 // pred_check_branch
                %804 = sbr.rel (0) target = $region82
              $region81: #{_encoder_call.1} parent=59 // pred_region
                %s805 = sdiv.u32.pop %s741, 3
                %s806 = srem.u32.pop %s741, 3
                // While loop
                $region83: #{_encoder_call.1} parent=81 // loop_pre_header
                  _
                $region84: #{_encoder_call.1} parent=81 // loop_header
                  %s808 = sphi 0, %s810
                  %p809 = scmp.ge.s32.totalorder %s808, %s805
                  %s813 = sphi 0, %s824
                  %s814 = sphi %s734, %s827
                  %s815 = sphi %s745, %s828
                $region85: #{_encoder_call.1} parent=81 // loop_header_branch
                  %812 = sbr.rel (%p809) target = $region89
                $region86: #{_encoder_call.1} parent=81 // loop_body
                  %v816 = vld [vmem:[%s814] sm:$0xff]
                  %817 = vst [vmem:[%s815] sm:$0xff] %v816
                  %v818 = vld [vmem:[%s814 + $0x8] sm:$0xff]
                  %819 = vst [vmem:[%s815 + $0x8] sm:$0xff] %v818
                  %v820 = vld [vmem:[%s814 + $0x10] sm:$0xff]
                  %821 = vst [vmem:[%s815 + $0x10] sm:$0xff] %v820
                  %s822 = sadd.s32 1, %s813
                  %p823 = scmp.ge.s32.totalorder %s822, %s805
                  %s824 = scalar_select %p823, 0, %s822
                  %s825 = smul.u32 %s824, 24
                  %s826 = smul.u32 %s824, 24
                  %s827 = scalar_lea.vmem %s734, %s825 [#allocation3]
                  %s828 = scalar_lea.vmem %s745, %s826
                $region87: #{_encoder_call.1} parent=81 // loop_footer
                  %s810 = sadd.s32 %s808, 1
                $region88: #{_encoder_call.1} parent=81 // loop_footer_branch
                  %807 = sbr.rel target = $region84
                $region89: #{_encoder_call.1} parent=81 // loop_exit
                  _
                %s829 = sdiv.u32.pop %s741, 3
                %s830 = srem.u32.pop %s741, 3
                %s831 = smul.u32 %s829, 3
                %s832 = smul.u32 8, %s831
                %s833 = scalar_lea.vmem %s734, %s832 [#allocation3]
                %s834 = smul.u32 8, %s831
                %s835 = scalar_lea.vmem %s745, %s834
                // While loop
                $region90: #{_encoder_call.1} parent=81 // loop_pre_header
                  _
                $region91: #{_encoder_call.1} parent=81 // loop_header
                  %s837 = sphi 0, %s839
                  %p838 = scmp.ge.s32.totalorder %s837, %s830
                  %s842 = sphi 0, %s849
                  %s843 = sphi %s833, %s852
                  %s844 = sphi %s835, %s853
                $region92: #{_encoder_call.1} parent=81 // loop_header_branch
                  %841 = sbr.rel (%p838) target = $region96
                $region93: #{_encoder_call.1} parent=81 // loop_body
                  %v845 = vld [vmem:[%s843] sm:$0xff]
                  %846 = vst [vmem:[%s844] sm:$0xff] %v845
                  %s847 = sadd.s32 1, %s842
                  %p848 = scmp.ge.s32.totalorder %s847, %s830
                  %s849 = scalar_select %p848, 0, %s847
                  %s850 = smul.u32 %s849, 8
                  %s851 = smul.u32 %s849, 8
                  %s852 = scalar_lea.vmem %s833, %s850 [#allocation3]
                  %s853 = scalar_lea.vmem %s835, %s851
                $region94: #{_encoder_call.1} parent=81 // loop_footer
                  %s839 = sadd.s32 %s837, 1
                $region95: #{_encoder_call.1} parent=81 // loop_footer_branch
                  %836 = sbr.rel target = $region91
                $region96: #{_encoder_call.1} parent=81 // loop_exit
                  _
              $region82: #{_encoder_call.1} parent=59 // pred_fallthru
                _
              // Predicated region
              $region97: #{_encoder_call.1} parent=59 // pred_check
                _
              $region98: #{_encoder_call.1} parent=59 // pred_check_branch
                %855 = sbr.rel target = $region100
              $region99: #{_encoder_call.1} parent=59 // pred_region
                _
              $region100: #{_encoder_call.1} parent=59 // pred_fallthru
                _
            $region60: #{_encoder_call.1} parent=55 // pred_fallthru
              _
            // Predicated region
            $region61: #{_encoder_call.1} parent=55 // pred_check
              _
            $region62: #{_encoder_call.1} parent=55 // pred_check_branch
              %752 = sbr.rel target = $region64
            $region63: #{_encoder_call.1} parent=55 // pred_region
              %s754 = sdiv.u32.pop %s741, 3
              %s755 = srem.u32.pop %s741, 3
              // While loop
              $region65: #{_encoder_call.1} parent=63 // loop_pre_header
                _
              $region66: #{_encoder_call.1} parent=63 // loop_header
                %s757 = sphi 0, %s759
                %p758 = scmp.ge.s32.totalorder %s757, %s754
                %s762 = sphi 0, %s773
                %s763 = sphi %s734, %s776
                %s764 = sphi %s745, %s777
              $region67: #{_encoder_call.1} parent=63 // loop_header_branch
                %761 = sbr.rel (%p758) target = $region71
              $region68: #{_encoder_call.1} parent=63 // loop_body
                %v765 = vld [vmem:[%s763] sm:$0xff]
                %766 = vst [vmem:[%s764] sm:$0xff] %v765
                %v767 = vld [vmem:[%s763 + $0x8] sm:$0xff]
                %768 = vst [vmem:[%s764 + $0x8] sm:$0xff] %v767
                %v769 = vld [vmem:[%s763 + $0x10] sm:$0xff]
                %770 = vst [vmem:[%s764 + $0x10] sm:$0xff] %v769
                %s771 = sadd.s32 1, %s762
                %p772 = scmp.ge.s32.totalorder %s771, %s754
                %s773 = scalar_select %p772, 0, %s771
                %s774 = smul.u32 %s773, 24
                %s775 = smul.u32 %s773, 24
                %s776 = scalar_lea.vmem %s734, %s774 [#allocation3]
                %s777 = scalar_lea.vmem %s745, %s775
              $region69: #{_encoder_call.1} parent=63 // loop_footer
                %s759 = sadd.s32 %s757, 1
              $region70: #{_encoder_call.1} parent=63 // loop_footer_branch
                %756 = sbr.rel target = $region66
              $region71: #{_encoder_call.1} parent=63 // loop_exit
                _
              %s778 = sdiv.u32.pop %s741, 3
              %s779 = srem.u32.pop %s741, 3
              %s780 = smul.u32 %s778, 3
              %s781 = smul.u32 8, %s780
              %s782 = scalar_lea.vmem %s734, %s781 [#allocation3]
              %s783 = smul.u32 8, %s780
              %s784 = scalar_lea.vmem %s745, %s783
              // While loop
              $region72: #{_encoder_call.1} parent=63 // loop_pre_header
                _
              $region73: #{_encoder_call.1} parent=63 // loop_header
                %s786 = sphi 0, %s788
                %p787 = scmp.ge.s32.totalorder %s786, %s779
                %s791 = sphi 0, %s798
                %s792 = sphi %s782, %s801
                %s793 = sphi %s784, %s802
              $region74: #{_encoder_call.1} parent=63 // loop_header_branch
                %790 = sbr.rel (%p787) target = $region78
              $region75: #{_encoder_call.1} parent=63 // loop_body
                %v794 = vld [vmem:[%s792] sm:$0xff]
                %795 = vst [vmem:[%s793] sm:$0xff] %v794
                %s796 = sadd.s32 1, %s791
                %p797 = scmp.ge.s32.totalorder %s796, %s779
                %s798 = scalar_select %p797, 0, %s796
                %s799 = smul.u32 %s798, 8
                %s800 = smul.u32 %s798, 8
                %s801 = scalar_lea.vmem %s782, %s799 [#allocation3]
                %s802 = scalar_lea.vmem %s784, %s800
              $region76: #{_encoder_call.1} parent=63 // loop_footer
                %s788 = sadd.s32 %s786, 1
              $region77: #{_encoder_call.1} parent=63 // loop_footer_branch
                %785 = sbr.rel target = $region73
              $region78: #{_encoder_call.1} parent=63 // loop_exit
                _
            $region64: #{_encoder_call.1} parent=55 // pred_fallthru
              _
          $region56: #{_encoder_call.1} parent=51 // pred_fallthru
            _
          %856 = vnop
        $region52: #{_encoder_call.1} parent=47 // pred_fallthru
          _
      $region48: #{_encoder_call.1} parent=5 // pred_fallthru
        _
      %p857 = scmp.le.s32.totalorder 2, %s15
      // Predicated region
      $region101: #{_encoder_call.1} parent=5 // pred_check
        %p858 = pneg %p857
      $region102: #{_encoder_call.1} parent=5 // pred_check_branch
        %860 = sbr.rel (%p858) target = $region104
      $region103: #{_encoder_call.1} parent=5 // pred_region
        %s861 = ssub.s32 %s15, 2
        // Predicated region
        $region105: #{_encoder_call.1} parent=103 // pred_check
          %p862 = pneg %p196
        $region106: #{_encoder_call.1} parent=103 // pred_check_branch
          %864 = sbr.rel (%p862) target = $region108
        $region107: #{_encoder_call.1} parent=103 // pred_region
          %s865 = sand.u32 %s181, 1
          %s866 = sand.u32 %s181, 1
          %s867 = smul.addr %s866, 24
          %s868 = scalar_lea.vmem [#allocation3], %s867
        $region108: #{_encoder_call.1} parent=103 // pred_fallthru
          _
      $region104: #{_encoder_call.1} parent=5 // pred_fallthru
        _
    $region6: #{_encoder_call.1} parent=1 // loop_footer
      %s19 = sadd.s32 1, %s15
    $region7: #{_encoder_call.1} parent=1 // loop_footer_branch
      %14 = sbr.rel target = $region3
    $region8: #{_encoder_call.1} parent=1 // loop_exit
      _

</llo_original>
